<compile_context>
chip_gen: v7x
topology: tpu7x:2x2x1
jax: 0.10.0
libtpu: 0.0.40
codegen_flags: <defaults>
</compile_context>

<pallas_src>
import functools

import jax
import jax.numpy as jnp
from jax.experimental import pallas as pl
from jax.experimental.pallas import tpu as pltpu


_VMEM_SPEC = pl.BlockSpec(memory_space=pltpu.MemorySpace.VMEM)


# ----------------------------------------------------------------------------
# In-kernel helpers
# ----------------------------------------------------------------------------
def _gconv_stream(a, z0, w_stacks, *, batch, pad, kmax):
    """Streaming diffusion graph-conv.

    a        : (N, N)       bf16  random-walk-normalized adjacency (transposed)
    z0       : (N, B*pad)   bf16  lane-folded input, per-batch block of `pad` lanes
    w_stacks : tuple of weight stacks; each stack is a tuple of (kmax+1)
               (pad, pad) bf16 matrices (one per diffusion order)
    returns  : tuple of (N, B*pad) f32 accumulations, one per weight stack.

    Only the Chebyshev prev2/prev1 pair and the f32 accumulators stay live; no
    (K+1)-order slab is materialized and no batch relayout happens (per-batch
    lane slices are 128-aligned views).
    """
    accs = [[None] * batch for _ in w_stacks]

    def accumulate(z_bf16, k):
        for wi, wstack in enumerate(w_stacks):
            wk = wstack[k]
            for b in range(batch):
                blk = z_bf16[:, b * pad:(b + 1) * pad]          # aligned view
                part = jnp.dot(blk, wk, preferred_element_type=jnp.float32)
                accs[wi][b] = part if accs[wi][b] is None else accs[wi][b] + part

    accumulate(z0, 0)
    if kmax >= 1:
        z1 = jnp.dot(a, z0, preferred_element_type=jnp.float32)
        accumulate(z1.astype(jnp.bfloat16), 1)
        prev2, prev1 = z0.astype(jnp.float32), z1
        for k in range(2, kmax + 1):
            z2 = 2.0 * jnp.dot(a, prev1.astype(jnp.bfloat16),
                               preferred_element_type=jnp.float32) - prev2
            accumulate(z2.astype(jnp.bfloat16), k)
            prev2, prev1 = prev1, z2

    # Per-batch accumulators -> one lane-folded array (128-aligned lane concat).
    return tuple(jnp.concatenate(a_list, axis=1) for a_list in accs)


# ----------------------------------------------------------------------------
# Fused decoder-step kernel (all RNN layers in one invocation)
# ----------------------------------------------------------------------------
def _decoder_kernel(a_ref, x0_ref, hin_ref, wr_ref, wu_ref, wc_ref,
                    br_ref, bu_ref, bc_ref, shift_ref, hout_ref,
                    *, batch, pad, kmax, num_layers):
    """One decoder step for all layers.

    Per-batch lane block layout (width `pad`, multiple of 128):
        lanes [0, U)        : hidden state h
        lanes [U, U+din)    : layer input x (layer 0: input_dim, else U)
        lanes [U+din, pad)  : zero padding
    """
    kp1 = kmax + 1
    a = a_ref[...]                                   # (N, N) bf16
    x_sh = x0_ref[...]                               # (N, B*P) bf16, layer-0 input
    shift = shift_ref[...] if num_layers > 1 else None

    for layer in range(num_layers):
        h = hin_ref[layer]                           # (N, B*P) f32, zeros outside [0,U)
        m = h.astype(jnp.bfloat16) + x_sh            # combined [h | x] block

        wr = tuple(wr_ref[layer * kp1 + k] for k in range(kp1))
        wu = tuple(wu_ref[layer * kp1 + k] for k in range(kp1))
        wc = tuple(wc_ref[layer * kp1 + k] for k in range(kp1))

        # ---- reset / update gates (streamed over diffusion orders) ---------
        gr, gu = _gconv_stream(a, m, (wr, wu), batch=batch, pad=pad, kmax=kmax)
        r = jax.nn.sigmoid(gr + br_ref[layer])
        u = jax.nn.sigmoid(gu + bu_ref[layer])

        # ---- candidate on [r*h | x] ----------------------------------------
        mc = (r * h).astype(jnp.bfloat16) + x_sh
        (gc,) = _gconv_stream(a, mc, (wc,), batch=batch, pad=pad, kmax=kmax)
        c = jnp.tanh(gc + bc_ref[layer])

        # ---- GRU state update (f32, lane-folded, layout-agnostic) ----------
        h_new = u * h + (1.0 - u) * c                # (N, B*P) f32
        hout_ref[layer] = h_new

        if layer + 1 < num_layers:
            # Move the new hidden state into the input lanes [U, 2U) of each
            # per-batch block for the next layer via one constant (P,P) shift
            # matmul per aligned block (no lane shuffles / concats).
            hb = h_new.astype(jnp.bfloat16)
            x_sh = jnp.concatenate(
                [jnp.dot(hb[:, b * pad:(b + 1) * pad], shift,
                         preferred_element_type=jnp.float32).astype(jnp.bfloat16)
                 for b in range(batch)], axis=1)


# ----------------------------------------------------------------------------
# Python wrapper (parameters + layout glue in XLA, outside the kernel)
# ----------------------------------------------------------------------------
class DecoderModelPallas:
    def __init__(self, key, *, num_nodes, rnn_units, max_diffusion_step=2,
                 num_rnn_layers=1, output_dim=1, input_dim=1, dim_poi=10,
                 add_self_loops=False, interpret=False):
        self.num_nodes = num_nodes
        self.rnn_units = rnn_units
        self.max_diffusion_step = max_diffusion_step
        self.num_rnn_layers = num_rnn_layers
        self.output_dim = output_dim
        self.input_dim = input_dim
        self.dim_poi = dim_poi
        self.add_self_loops = add_self_loops
        self.interpret = interpret

        u = rnn_units
        kp1 = max_diffusion_step + 1
        # Per-batch lane block [h | x | 0], padded to a multiple of 128 so every
        # per-batch slice in the kernel is a (8,128)-tile-aligned view and every
        # matmul output is >=128 lanes wide.
        feat_needed = u + max(input_dim, u)
        self.pad = 128 * ((feat_needed + 127) // 128)
        p = self.pad

        keys = list(jax.random.split(key, num_rnn_layers * 3 + 2))
        kit = iter(keys)

        def padded_slab(k, din):
            # Logical (kp1, U+din, U) weight.  Row layout inside the padded slab:
            # rows [0,U) = recurrent (h) weights, rows [U,U+din) = input (x)
            # weights.  (A PyTorch DCRNN checkpoint stores [x ; h] rows instead;
            # remapping is a one-time row permutation at load time.)
            w = 0.1 * jax.random.normal(k, (kp1, u + din, u), dtype=jnp.float32)
            slab = jnp.zeros((kp1, p, p), jnp.float32)
            slab = slab.at[:, :u + din, :u].set(w)
            return slab.astype(jnp.bfloat16)

        wr, wu, wc = [], [], []
        for layer in range(num_rnn_layers):
            din = input_dim if layer == 0 else u
            wr.append(padded_slab(next(kit), din))
            wu.append(padded_slab(next(kit), din))
            wc.append(padded_slab(next(kit), din))
        # Flat (L*(K+1), P, P) leading dim -> plain 2-D loads inside the kernel.
        self.wr = jnp.concatenate(wr, axis=0)
        self.wu = jnp.concatenate(wu, axis=0)
        self.wc = jnp.concatenate(wc, axis=0)

        bias_zero = jnp.zeros((num_rnn_layers, 1, p), jnp.float32)
        self.br = bias_zero.at[:, :, :u].set(1.0)    # DCRNN gate bias_start=1.0
        self.bu = bias_zero.at[:, :, :u].set(1.0)
        self.bc = bias_zero                          # candidate bias_start=0.0

        # Constant shift matrix moving lanes [0,U) -> [U,2U): feeds layer l's
        # output into layer l+1's input lanes with one aligned matmul.
        shift = jnp.zeros((p, p), jnp.float32)
        shift = shift.at[jnp.arange(u), u + jnp.arange(u)].set(1.0)
        self.shift = shift.astype(jnp.bfloat16)

        # projection_layer: Linear(rnn_units + dim_poi -> output_dim), split into
        # the hidden part and the (state/batch independent) POI part.  Hoisted
        # to the wrapper (XLA) per the performance review.
        self.wph = 0.1 * jax.random.normal(next(kit), (u, output_dim), jnp.float32)
        self.wpp = 0.1 * jax.random.normal(next(kit), (dim_poi, output_dim),
                                           jnp.float32)
        self.bp = jnp.zeros((output_dim,), jnp.float32)

    # -- tiny NxN normalization done once per call in plain JAX --------------
    def _random_walk_transposed(self, adj):
        # D^-1 A, transposed (standard DCRNN random-walk filter; no self loops
        # unless add_self_loops=True for GTS/HAGEN variants that add them).
        a = adj
        if self.add_self_loops:
            a = a + jnp.eye(adj.shape[0], dtype=adj.dtype)
        d = jnp.sum(a, axis=1)
        d_inv = jnp.where(d == 0.0, 0.0, 1.0 / d)
        return (d_inv[:, None] * a).T

    def __call__(self, inputs, adj_mx, nodevec1, nodevec2, POI_feat, labels,
                 hidden_state):
        # inputs       : (B, num_nodes * input_dim)
        # adj_mx       : (num_nodes, num_nodes)
        # POI_feat     : (num_nodes, dim_poi)
        # hidden_state : (num_rnn_layers, B, num_nodes * rnn_units)
        del nodevec1, nodevec2, labels   # unused in the reference forward
        batch = inputs.shape[0]
        n, u, p = self.num_nodes, self.rnn_units, self.pad
        layers, kmax = self.num_rnn_layers, self.max_diffusion_step
        din0 = self.input_dim

        a = self._random_walk_transposed(adj_mx).astype(jnp.bfloat16)

        # Layer-0 input placed at lanes [U, U+din) of each per-batch block.
        x3 = inputs.reshape(batch, n, din0).transpose(1, 0, 2)
        x3 = jnp.pad(x3, ((0, 0), (0, 0), (u, p - u - din0)))
        x0s = x3.reshape(n, batch * p).astype(jnp.bfloat16)

        # Hidden state (L, B, N*U) -> lane-folded padded (L, N, B*P) f32
        # (single batch transpose + pad, done once here in XLA).
        h4 = hidden_state.reshape(layers, batch, n, u).transpose(0, 2, 1, 3)
        h4 = jnp.pad(h4, ((0, 0), (0, 0), (0, 0), (0, p - u)))
        hin = h4.reshape(layers, n, batch * p).astype(jnp.float32)

        # Biases tiled per batch block (periodic along lanes).
        br = jnp.tile(self.br, (1, 1, batch))
        bu = jnp.tile(self.bu, (1, 1, batch))
        bc = jnp.tile(self.bc, (1, 1, batch))

        kernel = functools.partial(_decoder_kernel, batch=batch, pad=p,
                                   kmax=kmax, num_layers=layers)

        operands = (a, x0s, hin, self.wr, self.wu, self.wc, br, bu, bc,
                    self.shift)
        flops = layers * (2 * 2 * kmax * n * n * batch * p
                          + 3 * 2 * (kmax + 1) * batch * n * p * p)
        bytes_accessed = sum(int(x.size) * x.dtype.itemsize for x in operands)
        bytes_accessed += layers * n * batch * p * 4
        cost = pl.CostEstimate(flops=flops,
                               transcendentals=layers * 3 * n * batch * p,
                               bytes_accessed=bytes_accessed)

        hout = pl.pallas_call(
            kernel,
            out_shape=jax.ShapeDtypeStruct((layers, n, batch * p), jnp.float32),
            in_specs=[_VMEM_SPEC] * len(operands),
            out_specs=_VMEM_SPEC,
            input_output_aliases={2: 0},     # hidden-state in -> hidden-state out
            cost_estimate=cost,
            interpret=self.interpret,
        )(*operands)

        # Unpack hidden states: (L, N, B*P) -> (L, B, N*U).
        h5 = hout.reshape(layers, n, batch, p)[..., :u]
        hidden_new = h5.transpose(0, 2, 1, 3).reshape(layers, batch, n * u)

        # Output projection (hoisted: POI part is state independent; the hidden
        # part is a tiny matmul on data the kernel already wrote to HBM).
        poi_proj = jnp.dot(POI_feat, self.wpp) + self.bp            # (N, O)
        h_last = hidden_new[-1].reshape(batch * n, u)
        out = jnp.dot(h_last, self.wph).reshape(batch, n, self.output_dim)
        out = (out + poi_proj[None]).reshape(batch, n * self.output_dim)
        return out, hidden_new


# ----------------------------------------------------------------------------
# Pure-JAX reference (plain layout, same bf16 cast points) for correctness.
# ----------------------------------------------------------------------------
def reference_forward(model, inputs, adj_mx, POI_feat, hidden_state):
    batch = inputs.shape[0]
    n, u, kmax = model.num_nodes, model.rnn_units, model.max_diffusion_step
    kp1 = kmax + 1
    a = model._random_walk_transposed(adj_mx).astype(jnp.bfloat16)

    def gconv(z0, w, bias):
        # z0: (N, feat) bf16 ; w: (kp1, feat, U) bf16 ; bias: scalar
        acc = jnp.dot(z0, w[0], preferred_element_type=jnp.float32)
        if kmax >= 1:
            z1 = jnp.dot(a, z0, preferred_element_type=jnp.float32)
            acc += jnp.dot(z1.astype(jnp.bfloat16), w[1],
                           preferred_element_type=jnp.float32)
            prev2, prev1 = z0.astype(jnp.float32), z1
            for k in range(2, kmax + 1):
                z2 = 2.0 * jnp.dot(a, prev1.astype(jnp.bfloat16),
                                   preferred_element_type=jnp.float32) - prev2
                acc += jnp.dot(z2.astype(jnp.bfloat16), w[k],
                               preferred_element_type=jnp.float32)
                prev2, prev1 = prev1, z2
        return acc + bias

    x_all = inputs.reshape(batch, n, model.input_dim).astype(jnp.float32)
    h_all = hidden_state.reshape(model.num_rnn_layers, batch, n, u)
    h_all = h_all.astype(jnp.float32)

    hidden_news = []
    layer_in = x_all
    for layer in range(model.num_rnn_layers):
        din = model.input_dim if layer == 0 else u
        feat = u + din
        wr = model.wr[layer * kp1:(layer + 1) * kp1, :feat, :u]
        wu = model.wu[layer * kp1:(layer + 1) * kp1, :feat, :u]
        wc = model.wc[layer * kp1:(layer + 1) * kp1, :feat, :u]
        outs = []
        for b in range(batch):
            x_b = layer_in[b].astype(jnp.bfloat16)             # (N, din)
            h_b = h_all[layer, b]                              # (N, U) f32
            z0 = jnp.concatenate([h_b.astype(jnp.bfloat16), x_b], axis=1)
            r = jax.nn.sigmoid(gconv(z0, wr, 1.0))
            uu = jax.nn.sigmoid(gconv(z0, wu, 1.0))
            zc = jnp.concatenate([(r * h_b).astype(jnp.bfloat16), x_b], axis=1)
            c = jnp.tanh(gconv(zc, wc, 0.0))
            outs.append(uu * h_b + (1.0 - uu) * c)
        layer_out = jnp.stack(outs, axis=0)                    # (B, N, U)
        hidden_news.append(layer_out.reshape(batch, n * u))
        layer_in = layer_out
    hidden_new = jnp.stack(hidden_news, axis=0)

    poi_proj = jnp.dot(POI_feat, model.wpp) + model.bp
    h_last = hidden_new[-1].reshape(batch * n, u)
    out = jnp.dot(h_last, model.wph).reshape(batch, n, model.output_dim)
    out = (out + poi_proj[None]).reshape(batch, n * model.output_dim)
    return out, hidden_new


# ----------------------------------------------------------------------------
# Example run
# ----------------------------------------------------------------------------
def _run_case(*, batch, n, u, k, layers, out_dim, din, dim_poi, seed, interpret):
    key = jax.random.PRNGKey(seed)
    k_model, k_x, k_adj, k_poi, k_h = jax.random.split(key, 5)

    model = DecoderModelPallas(
        k_model, num_nodes=n, rnn_units=u, max_diffusion_step=k,
        num_rnn_layers=layers, output_dim=out_dim, input_dim=din,
        dim_poi=dim_poi, interpret=interpret)

    inputs = jax.random.normal(k_x, (batch, n * din), dtype=jnp.float32)
    adj_mx = jnp.abs(jax.random.normal(k_adj, (n, n), dtype=jnp.float32))
    POI_feat = jax.random.normal(k_poi, (n, dim_poi), dtype=jnp.float32)
    hidden = 0.1 * jax.random.normal(k_h, (layers, batch, n * u),
                                     dtype=jnp.float32)
    nodevec1 = jnp.zeros((n, 10), jnp.float32)            # unused by forward
    nodevec2 = jnp.zeros((10, n), jnp.float32)            # unused by forward
    labels = jnp.zeros((batch, n * out_dim), jnp.float32)  # unused by forward

    out, hstack = model(inputs, adj_mx, nodevec1, nodevec2, POI_feat, labels,
                        hidden)
    jax.block_until_ready(out)
    jax.block_until_ready(hstack)

    assert out.shape == (batch, n * out_dim), out.shape
    assert hstack.shape == (layers, batch, n * u), hstack.shape

    # Compare against the pure-JAX reference (same bf16 cast points; tolerance
    # covers MXU / XLA accumulation-order differences with large margin).
    ref_out, ref_h = reference_forward(model, inputs, adj_mx, POI_feat, hidden)
    err_o = float(jnp.max(jnp.abs(out - ref_out)))
    err_h = float(jnp.max(jnp.abs(hstack - ref_h)))
    assert err_o < 2e-2, err_o
    assert err_h < 2e-2, err_h
    return out, hstack


if __name__ == "__main__":
    # Primary compiled run on TPU: small aligned shapes, single RNN layer.
    _run_case(batch=2, n=16, u=32, k=2, layers=1, out_dim=1, din=1, dim_poi=10,
              seed=0, interpret=False)
    # Compiled run exercising the fused multi-layer path (adjacency + weights
    # stay resident across layers inside one pallas_call).
    _run_case(batch=2, n=16, u=32, k=2, layers=2, out_dim=1, din=1, dim_poi=10,
              seed=1, interpret=False)
    # Robustness check: unaligned N / odd batch, 2 layers, Pallas interpret
    # mode, compared against the pure-JAX reference.
    _run_case(batch=3, n=20, u=32, k=2, layers=2, out_dim=1, din=1, dim_poi=10,
              seed=2, interpret=True)
    print("KERNEL_OK")
</pallas_src>

<mosaic_0001>
module attributes {stable_mosaic.version = 11 : i64} {
  func.func @_decoder_kernel(%arg0: memref<16x16xbf16, #tpu.memory_space<vmem>>, %arg1: memref<16x256xbf16, #tpu.memory_space<vmem>>, %arg2: memref<1x16x256xf32, #tpu.memory_space<vmem>>, %arg3: memref<3x128x128xbf16, #tpu.memory_space<vmem>>, %arg4: memref<3x128x128xbf16, #tpu.memory_space<vmem>>, %arg5: memref<3x128x128xbf16, #tpu.memory_space<vmem>>, %arg6: memref<1x1x256xf32, #tpu.memory_space<vmem>>, %arg7: memref<1x1x256xf32, #tpu.memory_space<vmem>>, %arg8: memref<1x1x256xf32, #tpu.memory_space<vmem>>, %arg9: memref<128x128xbf16, #tpu.memory_space<vmem>>, %arg10: memref<1x16x256xf32, #tpu.memory_space<vmem>>) attributes {dimension_semantics = [], scalar_prefetch = 0 : i64, scratch_operands = 0 : i64, tpu.core_type = #tpu.core_type<tc>} {
    %c0 = arith.constant 0 : index
    %c0_0 = arith.constant 0 : index
    %0 = vector.load %arg0[%c0, %c0_0] : memref<16x16xbf16, #tpu.memory_space<vmem>>, vector<16x16xbf16>
    %c0_1 = arith.constant 0 : index
    %c0_2 = arith.constant 0 : index
    %1 = vector.load %arg1[%c0_1, %c0_2] : memref<16x256xbf16, #tpu.memory_space<vmem>>, vector<16x256xbf16>
    %c0_3 = arith.constant 0 : index
    %c0_4 = arith.constant 0 : index
    %c0_5 = arith.constant 0 : index
    %2 = vector.load %arg2[%c0_3, %c0_4, %c0_5] : memref<1x16x256xf32, #tpu.memory_space<vmem>>, vector<1x16x256xf32>
    %3 = vector.shape_cast %2 : vector<1x16x256xf32> to vector<16x256xf32>
    %4 = arith.truncf %3 : vector<16x256xf32> to vector<16x256xbf16>
    %5 = arith.addf %4, %1 : vector<16x256xbf16>
    %c0_6 = arith.constant 0 : index
    %c0_7 = arith.constant 0 : index
    %c0_8 = arith.constant 0 : index
    %6 = vector.load %arg3[%c0_6, %c0_7, %c0_8] : memref<3x128x128xbf16, #tpu.memory_space<vmem>>, vector<1x128x128xbf16>
    %7 = vector.shape_cast %6 : vector<1x128x128xbf16> to vector<128x128xbf16>
    %c1 = arith.constant 1 : index
    %c0_9 = arith.constant 0 : index
    %c0_10 = arith.constant 0 : index
    %8 = vector.load %arg3[%c1, %c0_9, %c0_10] : memref<3x128x128xbf16, #tpu.memory_space<vmem>>, vector<1x128x128xbf16>
    %9 = vector.shape_cast %8 : vector<1x128x128xbf16> to vector<128x128xbf16>
    %c2 = arith.constant 2 : index
    %c0_11 = arith.constant 0 : index
    %c0_12 = arith.constant 0 : index
    %10 = vector.load %arg3[%c2, %c0_11, %c0_12] : memref<3x128x128xbf16, #tpu.memory_space<vmem>>, vector<1x128x128xbf16>
    %11 = vector.shape_cast %10 : vector<1x128x128xbf16> to vector<128x128xbf16>
    %c0_13 = arith.constant 0 : index
    %c0_14 = arith.constant 0 : index
    %c0_15 = arith.constant 0 : index
    %12 = vector.load %arg4[%c0_13, %c0_14, %c0_15] : memref<3x128x128xbf16, #tpu.memory_space<vmem>>, vector<1x128x128xbf16>
    %13 = vector.shape_cast %12 : vector<1x128x128xbf16> to vector<128x128xbf16>
    %c1_16 = arith.constant 1 : index
    %c0_17 = arith.constant 0 : index
    %c0_18 = arith.constant 0 : index
    %14 = vector.load %arg4[%c1_16, %c0_17, %c0_18] : memref<3x128x128xbf16, #tpu.memory_space<vmem>>, vector<1x128x128xbf16>
    %15 = vector.shape_cast %14 : vector<1x128x128xbf16> to vector<128x128xbf16>
    %c2_19 = arith.constant 2 : index
    %c0_20 = arith.constant 0 : index
    %c0_21 = arith.constant 0 : index
    %16 = vector.load %arg4[%c2_19, %c0_20, %c0_21] : memref<3x128x128xbf16, #tpu.memory_space<vmem>>, vector<1x128x128xbf16>
    %17 = vector.shape_cast %16 : vector<1x128x128xbf16> to vector<128x128xbf16>
    %c0_22 = arith.constant 0 : index
    %c0_23 = arith.constant 0 : index
    %c0_24 = arith.constant 0 : index
    %18 = vector.load %arg5[%c0_22, %c0_23, %c0_24] : memref<3x128x128xbf16, #tpu.memory_space<vmem>>, vector<1x128x128xbf16>
    %19 = vector.shape_cast %18 : vector<1x128x128xbf16> to vector<128x128xbf16>
    %c1_25 = arith.constant 1 : index
    %c0_26 = arith.constant 0 : index
    %c0_27 = arith.constant 0 : index
    %20 = vector.load %arg5[%c1_25, %c0_26, %c0_27] : memref<3x128x128xbf16, #tpu.memory_space<vmem>>, vector<1x128x128xbf16>
    %21 = vector.shape_cast %20 : vector<1x128x128xbf16> to vector<128x128xbf16>
    %c2_28 = arith.constant 2 : index
    %c0_29 = arith.constant 0 : index
    %c0_30 = arith.constant 0 : index
    %22 = vector.load %arg5[%c2_28, %c0_29, %c0_30] : memref<3x128x128xbf16, #tpu.memory_space<vmem>>, vector<1x128x128xbf16>
    %23 = vector.shape_cast %22 : vector<1x128x128xbf16> to vector<128x128xbf16>
    %24 = vector.extract_strided_slice %5 {offsets = [0, 0], sizes = [16, 128], strides = [1, 1]} : vector<16x256xbf16> to vector<16x128xbf16>
    %cst = arith.constant dense<0.000000e+00> : vector<16x128xf32>
    %25 = tpu.matmul %24, %7, %cst {dimension_numbers = #tpu.dot_dimension_numbers<[1], [0], [0], [1], [0, 0, 1, 1], [], []>} : vector<16x128xbf16>, vector<128x128xbf16>, vector<16x128xf32> -> vector<16x128xf32>
    %26 = vector.extract_strided_slice %5 {offsets = [0, 128], sizes = [16, 128], strides = [1, 1]} : vector<16x256xbf16> to vector<16x128xbf16>
    %cst_31 = arith.constant dense<0.000000e+00> : vector<16x128xf32>
    %27 = tpu.matmul %26, %7, %cst_31 {dimension_numbers = #tpu.dot_dimension_numbers<[1], [0], [0], [1], [0, 0, 1, 1], [], []>} : vector<16x128xbf16>, vector<128x128xbf16>, vector<16x128xf32> -> vector<16x128xf32>
    %28 = vector.extract_strided_slice %5 {offsets = [0, 0], sizes = [16, 128], strides = [1, 1]} : vector<16x256xbf16> to vector<16x128xbf16>
    %cst_32 = arith.constant dense<0.000000e+00> : vector<16x128xf32>
    %29 = tpu.matmul %28, %13, %cst_32 {dimension_numbers = #tpu.dot_dimension_numbers<[1], [0], [0], [1], [0, 0, 1, 1], [], []>} : vector<16x128xbf16>, vector<128x128xbf16>, vector<16x128xf32> -> vector<16x128xf32>
    %30 = vector.extract_strided_slice %5 {offsets = [0, 128], sizes = [16, 128], strides = [1, 1]} : vector<16x256xbf16> to vector<16x128xbf16>
    %cst_33 = arith.constant dense<0.000000e+00> : vector<16x128xf32>
    %31 = tpu.matmul %30, %13, %cst_33 {dimension_numbers = #tpu.dot_dimension_numbers<[1], [0], [0], [1], [0, 0, 1, 1], [], []>} : vector<16x128xbf16>, vector<128x128xbf16>, vector<16x128xf32> -> vector<16x128xf32>
    %cst_34 = arith.constant dense<0.000000e+00> : vector<16x256xf32>
    %32 = tpu.matmul %0, %5, %cst_34 {dimension_numbers = #tpu.dot_dimension_numbers<[1], [0], [0], [1], [0, 0, 1, 1], [], []>} : vector<16x16xbf16>, vector<16x256xbf16>, vector<16x256xf32> -> vector<16x256xf32>
    %33 = arith.truncf %32 : vector<16x256xf32> to vector<16x256xbf16>
    %34 = vector.extract_strided_slice %33 {offsets = [0, 0], sizes = [16, 128], strides = [1, 1]} : vector<16x256xbf16> to vector<16x128xbf16>
    %cst_35 = arith.constant dense<0.000000e+00> : vector<16x128xf32>
    %35 = tpu.matmul %34, %9, %cst_35 {dimension_numbers = #tpu.dot_dimension_numbers<[1], [0], [0], [1], [0, 0, 1, 1], [], []>} : vector<16x128xbf16>, vector<128x128xbf16>, vector<16x128xf32> -> vector<16x128xf32>
    %36 = arith.addf %25, %35 : vector<16x128xf32>
    %37 = vector.extract_strided_slice %33 {offsets = [0, 128], sizes = [16, 128], strides = [1, 1]} : vector<16x256xbf16> to vector<16x128xbf16>
    %cst_36 = arith.constant dense<0.000000e+00> : vector<16x128xf32>
    %38 = tpu.matmul %37, %9, %cst_36 {dimension_numbers = #tpu.dot_dimension_numbers<[1], [0], [0], [1], [0, 0, 1, 1], [], []>} : vector<16x128xbf16>, vector<128x128xbf16>, vector<16x128xf32> -> vector<16x128xf32>
    %39 = arith.addf %27, %38 : vector<16x128xf32>
    %40 = vector.extract_strided_slice %33 {offsets = [0, 0], sizes = [16, 128], strides = [1, 1]} : vector<16x256xbf16> to vector<16x128xbf16>
    %cst_37 = arith.constant dense<0.000000e+00> : vector<16x128xf32>
    %41 = tpu.matmul %40, %15, %cst_37 {dimension_numbers = #tpu.dot_dimension_numbers<[1], [0], [0], [1], [0, 0, 1, 1], [], []>} : vector<16x128xbf16>, vector<128x128xbf16>, vector<16x128xf32> -> vector<16x128xf32>
    %42 = arith.addf %29, %41 : vector<16x128xf32>
    %43 = vector.extract_strided_slice %33 {offsets = [0, 128], sizes = [16, 128], strides = [1, 1]} : vector<16x256xbf16> to vector<16x128xbf16>
    %cst_38 = arith.constant dense<0.000000e+00> : vector<16x128xf32>
    %44 = tpu.matmul %43, %15, %cst_38 {dimension_numbers = #tpu.dot_dimension_numbers<[1], [0], [0], [1], [0, 0, 1, 1], [], []>} : vector<16x128xbf16>, vector<128x128xbf16>, vector<16x128xf32> -> vector<16x128xf32>
    %45 = arith.addf %31, %44 : vector<16x128xf32>
    %46 = arith.extf %5 : vector<16x256xbf16> to vector<16x256xf32>
    %47 = arith.truncf %32 : vector<16x256xf32> to vector<16x256xbf16>
    %cst_39 = arith.constant dense<0.000000e+00> : vector<16x256xf32>
    %48 = tpu.matmul %0, %47, %cst_39 {dimension_numbers = #tpu.dot_dimension_numbers<[1], [0], [0], [1], [0, 0, 1, 1], [], []>} : vector<16x16xbf16>, vector<16x256xbf16>, vector<16x256xf32> -> vector<16x256xf32>
    %cst_40 = arith.constant 2.000000e+00 : f32
    %49 = vector.broadcast %cst_40 : f32 to vector<16x256xf32>
    %50 = arith.mulf %49, %48 : vector<16x256xf32>
    %51 = arith.subf %50, %46 : vector<16x256xf32>
    %52 = arith.truncf %51 : vector<16x256xf32> to vector<16x256xbf16>
    %53 = vector.extract_strided_slice %52 {offsets = [0, 0], sizes = [16, 128], strides = [1, 1]} : vector<16x256xbf16> to vector<16x128xbf16>
    %cst_41 = arith.constant dense<0.000000e+00> : vector<16x128xf32>
    %54 = tpu.matmul %53, %11, %cst_41 {dimension_numbers = #tpu.dot_dimension_numbers<[1], [0], [0], [1], [0, 0, 1, 1], [], []>} : vector<16x128xbf16>, vector<128x128xbf16>, vector<16x128xf32> -> vector<16x128xf32>
    %55 = arith.addf %36, %54 : vector<16x128xf32>
    %56 = vector.extract_strided_slice %52 {offsets = [0, 128], sizes = [16, 128], strides = [1, 1]} : vector<16x256xbf16> to vector<16x128xbf16>
    %cst_42 = arith.constant dense<0.000000e+00> : vector<16x128xf32>
    %57 = tpu.matmul %56, %11, %cst_42 {dimension_numbers = #tpu.dot_dimension_numbers<[1], [0], [0], [1], [0, 0, 1, 1], [], []>} : vector<16x128xbf16>, vector<128x128xbf16>, vector<16x128xf32> -> vector<16x128xf32>
    %58 = arith.addf %39, %57 : vector<16x128xf32>
    %59 = vector.extract_strided_slice %52 {offsets = [0, 0], sizes = [16, 128], strides = [1, 1]} : vector<16x256xbf16> to vector<16x128xbf16>
    %cst_43 = arith.constant dense<0.000000e+00> : vector<16x128xf32>
    %60 = tpu.matmul %59, %17, %cst_43 {dimension_numbers = #tpu.dot_dimension_numbers<[1], [0], [0], [1], [0, 0, 1, 1], [], []>} : vector<16x128xbf16>, vector<128x128xbf16>, vector<16x128xf32> -> vector<16x128xf32>
    %61 = arith.addf %42, %60 : vector<16x128xf32>
    %62 = vector.extract_strided_slice %52 {offsets = [0, 128], sizes = [16, 128], strides = [1, 1]} : vector<16x256xbf16> to vector<16x128xbf16>
    %cst_44 = arith.constant dense<0.000000e+00> : vector<16x128xf32>
    %63 = tpu.matmul %62, %17, %cst_44 {dimension_numbers = #tpu.dot_dimension_numbers<[1], [0], [0], [1], [0, 0, 1, 1], [], []>} : vector<16x128xbf16>, vector<128x128xbf16>, vector<16x128xf32> -> vector<16x128xf32>
    %64 = arith.addf %45, %63 : vector<16x128xf32>
    %65 = tpu.concatenate %55, %58 in 1 : vector<16x128xf32>, vector<16x128xf32> -> vector<16x256xf32>
    %66 = tpu.concatenate %61, %64 in 1 : vector<16x128xf32>, vector<16x128xf32> -> vector<16x256xf32>
    %c0_45 = arith.constant 0 : index
    %c0_46 = arith.constant 0 : index
    %c0_47 = arith.constant 0 : index
    %67 = vector.load %arg6[%c0_45, %c0_46, %c0_47] : memref<1x1x256xf32, #tpu.memory_space<vmem>>, vector<1x1x256xf32>
    %68 = vector.shape_cast %67 : vector<1x1x256xf32> to vector<1x256xf32>
    %69 = vector.broadcast %68 : vector<1x256xf32> to vector<16x256xf32>
    %70 = arith.addf %65, %69 : vector<16x256xf32>
    %71 = arith.negf %70 : vector<16x256xf32>
    %72 = math.exp %71 : vector<16x256xf32>
    %cst_48 = arith.constant 1.000000e+00 : f32
    %73 = vector.broadcast %cst_48 : f32 to vector<16x256xf32>
    %74 = arith.addf %73, %72 : vector<16x256xf32>
    %75 = arith.divf %73, %74 : vector<16x256xf32>
    %c0_49 = arith.constant 0 : index
    %c0_50 = arith.constant 0 : index
    %c0_51 = arith.constant 0 : index
    %76 = vector.load %arg7[%c0_49, %c0_50, %c0_51] : memref<1x1x256xf32, #tpu.memory_space<vmem>>, vector<1x1x256xf32>
    %77 = vector.shape_cast %76 : vector<1x1x256xf32> to vector<1x256xf32>
    %78 = vector.broadcast %77 : vector<1x256xf32> to vector<16x256xf32>
    %79 = arith.addf %66, %78 : vector<16x256xf32>
    %80 = arith.negf %79 : vector<16x256xf32>
    %81 = math.exp %80 : vector<16x256xf32>
    %cst_52 = arith.constant 1.000000e+00 : f32
    %82 = vector.broadcast %cst_52 : f32 to vector<16x256xf32>
    %83 = arith.addf %82, %81 : vector<16x256xf32>
    %84 = arith.divf %82, %83 : vector<16x256xf32>
    %85 = arith.mulf %75, %3 : vector<16x256xf32>
    %86 = arith.truncf %85 : vector<16x256xf32> to vector<16x256xbf16>
    %87 = arith.addf %86, %1 : vector<16x256xbf16>
    %88 = vector.extract_strided_slice %87 {offsets = [0, 0], sizes = [16, 128], strides = [1, 1]} : vector<16x256xbf16> to vector<16x128xbf16>
    %cst_53 = arith.constant dense<0.000000e+00> : vector<16x128xf32>
    %89 = tpu.matmul %88, %19, %cst_53 {dimension_numbers = #tpu.dot_dimension_numbers<[1], [0], [0], [1], [0, 0, 1, 1], [], []>} : vector<16x128xbf16>, vector<128x128xbf16>, vector<16x128xf32> -> vector<16x128xf32>
    %90 = vector.extract_strided_slice %87 {offsets = [0, 128], sizes = [16, 128], strides = [1, 1]} : vector<16x256xbf16> to vector<16x128xbf16>
    %cst_54 = arith.constant dense<0.000000e+00> : vector<16x128xf32>
    %91 = tpu.matmul %90, %19, %cst_54 {dimension_numbers = #tpu.dot_dimension_numbers<[1], [0], [0], [1], [0, 0, 1, 1], [], []>} : vector<16x128xbf16>, vector<128x128xbf16>, vector<16x128xf32> -> vector<16x128xf32>
    %cst_55 = arith.constant dense<0.000000e+00> : vector<16x256xf32>
    %92 = tpu.matmul %0, %87, %cst_55 {dimension_numbers = #tpu.dot_dimension_numbers<[1], [0], [0], [1], [0, 0, 1, 1], [], []>} : vector<16x16xbf16>, vector<16x256xbf16>, vector<16x256xf32> -> vector<16x256xf32>
    %93 = arith.truncf %92 : vector<16x256xf32> to vector<16x256xbf16>
    %94 = vector.extract_strided_slice %93 {offsets = [0, 0], sizes = [16, 128], strides = [1, 1]} : vector<16x256xbf16> to vector<16x128xbf16>
    %cst_56 = arith.constant dense<0.000000e+00> : vector<16x128xf32>
    %95 = tpu.matmul %94, %21, %cst_56 {dimension_numbers = #tpu.dot_dimension_numbers<[1], [0], [0], [1], [0, 0, 1, 1], [], []>} : vector<16x128xbf16>, vector<128x128xbf16>, vector<16x128xf32> -> vector<16x128xf32>
    %96 = arith.addf %89, %95 : vector<16x128xf32>
    %97 = vector.extract_strided_slice %93 {offsets = [0, 128], sizes = [16, 128], strides = [1, 1]} : vector<16x256xbf16> to vector<16x128xbf16>
    %cst_57 = arith.constant dense<0.000000e+00> : vector<16x128xf32>
    %98 = tpu.matmul %97, %21, %cst_57 {dimension_numbers = #tpu.dot_dimension_numbers<[1], [0], [0], [1], [0, 0, 1, 1], [], []>} : vector<16x128xbf16>, vector<128x128xbf16>, vector<16x128xf32> -> vector<16x128xf32>
    %99 = arith.addf %91, %98 : vector<16x128xf32>
    %100 = arith.extf %87 : vector<16x256xbf16> to vector<16x256xf32>
    %101 = arith.truncf %92 : vector<16x256xf32> to vector<16x256xbf16>
    %cst_58 = arith.constant dense<0.000000e+00> : vector<16x256xf32>
    %102 = tpu.matmul %0, %101, %cst_58 {dimension_numbers = #tpu.dot_dimension_numbers<[1], [0], [0], [1], [0, 0, 1, 1], [], []>} : vector<16x16xbf16>, vector<16x256xbf16>, vector<16x256xf32> -> vector<16x256xf32>
    %cst_59 = arith.constant 2.000000e+00 : f32
    %103 = vector.broadcast %cst_59 : f32 to vector<16x256xf32>
    %104 = arith.mulf %103, %102 : vector<16x256xf32>
    %105 = arith.subf %104, %100 : vector<16x256xf32>
    %106 = arith.truncf %105 : vector<16x256xf32> to vector<16x256xbf16>
    %107 = vector.extract_strided_slice %106 {offsets = [0, 0], sizes = [16, 128], strides = [1, 1]} : vector<16x256xbf16> to vector<16x128xbf16>
    %cst_60 = arith.constant dense<0.000000e+00> : vector<16x128xf32>
    %108 = tpu.matmul %107, %23, %cst_60 {dimension_numbers = #tpu.dot_dimension_numbers<[1], [0], [0], [1], [0, 0, 1, 1], [], []>} : vector<16x128xbf16>, vector<128x128xbf16>, vector<16x128xf32> -> vector<16x128xf32>
    %109 = arith.addf %96, %108 : vector<16x128xf32>
    %110 = vector.extract_strided_slice %106 {offsets = [0, 128], sizes = [16, 128], strides = [1, 1]} : vector<16x256xbf16> to vector<16x128xbf16>
    %cst_61 = arith.constant dense<0.000000e+00> : vector<16x128xf32>
    %111 = tpu.matmul %110, %23, %cst_61 {dimension_numbers = #tpu.dot_dimension_numbers<[1], [0], [0], [1], [0, 0, 1, 1], [], []>} : vector<16x128xbf16>, vector<128x128xbf16>, vector<16x128xf32> -> vector<16x128xf32>
    %112 = arith.addf %99, %111 : vector<16x128xf32>
    %113 = tpu.concatenate %109, %112 in 1 : vector<16x128xf32>, vector<16x128xf32> -> vector<16x256xf32>
    %c0_62 = arith.constant 0 : index
    %c0_63 = arith.constant 0 : index
    %c0_64 = arith.constant 0 : index
    %114 = vector.load %arg8[%c0_62, %c0_63, %c0_64] : memref<1x1x256xf32, #tpu.memory_space<vmem>>, vector<1x1x256xf32>
    %115 = vector.shape_cast %114 : vector<1x1x256xf32> to vector<1x256xf32>
    %116 = vector.broadcast %115 : vector<1x256xf32> to vector<16x256xf32>
    %117 = arith.addf %113, %116 : vector<16x256xf32>
    %118 = math.tanh %117 : vector<16x256xf32>
    %119 = arith.mulf %84, %3 : vector<16x256xf32>
    %cst_65 = arith.constant 1.000000e+00 : f32
    %120 = vector.broadcast %cst_65 : f32 to vector<16x256xf32>
    %121 = arith.subf %120, %84 : vector<16x256xf32>
    %122 = arith.mulf %121, %118 : vector<16x256xf32>
    %123 = arith.addf %119, %122 : vector<16x256xf32>
    %c0_66 = arith.constant 0 : index
    %c0_67 = arith.constant 0 : index
    %c0_68 = arith.constant 0 : index
    %124 = vector.load %arg10[%c0_66, %c0_67, %c0_68] : memref<1x16x256xf32, #tpu.memory_space<vmem>>, vector<1x16x256xf32>
    %125 = vector.shape_cast %124 : vector<1x16x256xf32> to vector<16x256xf32>
    %126 = vector.shape_cast %123 : vector<16x256xf32> to vector<1x16x256xf32>
    tpu.vector_store %arg10[%c0_66, %c0_67, %c0_68], %126 {strides = array<i32>} : memref<1x16x256xf32, #tpu.memory_space<vmem>>, vector<1x16x256xf32>,
    return
  }
}

</mosaic_0001>

<llo_original>
// kernel: tpu_custom_call.1
$region0: #{tpu_custom_call.1}
  #allocation0 [shape = 'u32[]', space=smem, size = 0x4, offset = 0x4, fixed_abs, tag = 'smem constant byte address 0x4 - core index']
  #allocation1 [shape = 'u32[144,128]{1,0:T(1,128)}', space=vmem, size = 0x12000, scoped, tag = 'internal scratch']
  %s0 = inlined_call_operand.vmem [shape: bf16[16,16], index: 0, kind: input, shape index: {}]
  %s1 = inlined_call_operand.vmem [shape: bf16[16,256], index: 1, kind: input, shape index: {}]
  %s2 = inlined_call_operand.hbm [shape: f32[1,16,256], index: 2, kind: input, shape index: {}, may-alias: {2,10}]
  %s3 = inlined_call_operand.hbm [shape: bf16[3,128,128], index: 3, kind: input, shape index: {}]
  %s4 = inlined_call_operand.hbm [shape: bf16[3,128,128], index: 4, kind: input, shape index: {}]
  %s5 = inlined_call_operand.hbm [shape: bf16[3,128,128], index: 5, kind: input, shape index: {}]
  %s6 = inlined_call_operand.vmem [shape: f32[1,1,256], index: 6, kind: input, shape index: {}]
  %s7 = inlined_call_operand.hbm [shape: f32[1,1,256], index: 7, kind: input, shape index: {}]
  %s8 = inlined_call_operand.hbm [shape: f32[1,1,256], index: 8, kind: input, shape index: {}]
  %s9 = inlined_call_operand.vmem [shape: bf16[128,128], index: 9, kind: input, shape index: {}]
  %s10 = inlined_call_operand.hbm [shape: f32[1,16,256], index: 10, kind: output, shape index: {}, may-alias: {2,10}]
  %s11 = sld [smem:[#allocation0]]
  $region74: #{tpu_custom_call.1} parent=0
    _
  %s13 = ssub.s32 1, %s11
  %s14 = scalar_select 0, %s13, %s11
  $region1: #{tpu_custom_call.1} parent=0
    #allocation2 [shape = 'u8[16384]{0}', space=vmem, size = 0x4000, scoped, tag = 'input window, operand 2, single buffered']
    #allocation3 [shape = 's32[1]{0}', space=sflag, size = 0x4, scoped, tag = 'scoped memory for tpu_custom_call.1']
    #allocation4 [shape = 's32[1]{0}', space=sflag, size = 0x4, scoped, tag = 'scoped memory for tpu_custom_call.1']
    #allocation5 [shape = 'u8[98304]{0}', space=vmem, size = 0x18000, scoped, tag = 'input window, operand 3, single buffered']
    #allocation6 [shape = 's32[1]{0}', space=sflag, size = 0x4, scoped, tag = 'scoped memory for tpu_custom_call.1']
    #allocation7 [shape = 'u8[98304]{0}', space=vmem, size = 0x18000, scoped, tag = 'input window, operand 4, single buffered']
    #allocation8 [shape = 'u8[98304]{0}', space=vmem, size = 0x18000, scoped, tag = 'input window, operand 5, single buffered']
    #allocation9 [shape = 's32[1]{0}', space=sflag, size = 0x4, scoped, tag = 'scoped memory for tpu_custom_call.1']
    #allocation10 [shape = 'u8[1024]{0}', space=vmem, size = 0x400, scoped, tag = 'input window, operand 7, single buffered']
    #allocation11 [shape = 'u8[1024]{0}', space=vmem, size = 0x400, scoped, tag = 'input window, operand 8, single buffered']
    #allocation12 [shape = 's32[1]{0}', space=sflag, size = 0x4, scoped, tag = 'scoped memory for tpu_custom_call.1']
    #allocation13 [shape = 'u8[16384]{0}', space=vmem, size = 0x4000, scoped, tag = 'output window, operand 0, single buffered']
    %15 = vsyncpa [#allocation3], 0
    %16 = vsyncpa [#allocation6], 0
    %17 = vsyncpa [#allocation9], 0
    %18 = vsyncpa [#allocation12], 0
    %19 = vsyncpa [#allocation4], 0
    // Predicated region
    $region2: #{tpu_custom_call.1} parent=1 // pred_check
      _
    $region3: #{tpu_custom_call.1} parent=1 // pred_check_branch
      %21 = sbr.rel (0) target = $region5
    $region4: #{tpu_custom_call.1} parent=1 // pred_region
      _
    $region5: #{tpu_custom_call.1} parent=1 // pred_fallthru
      _
    // Predicated region
    $region6: #{tpu_custom_call.1} parent=1 // pred_check
      _
    $region7: #{tpu_custom_call.1} parent=1 // pred_check_branch
      %23 = sbr.rel (0) target = $region9
    $region8: #{tpu_custom_call.1} parent=1 // pred_region
      _
    $region9: #{tpu_custom_call.1} parent=1 // pred_fallthru
      _
    // Predicated region
    $region10: #{tpu_custom_call.1} parent=1 // pred_check
      _
    $region11: #{tpu_custom_call.1} parent=1 // pred_check_branch
      %25 = sbr.rel (0) target = $region13
    $region12: #{tpu_custom_call.1} parent=1 // pred_region
      %s27 = ssub.s32 512, 512
      %28 = vsyncadd [#allocation3], %s27
      %s29 = sshll.u32 [#allocation2], 4
      %s30 = int_to_ptr.vmem [resolvable:$true] %s29
      %35 = dma.hbm_to_vmem [thread:$0]  %s2, 512, %s30, [#allocation3], 256, 256, 16
    $region13: #{tpu_custom_call.1} parent=1 // pred_fallthru
      _
    // Predicated region
    $region14: #{tpu_custom_call.1} parent=1 // pred_check
      _
    $region15: #{tpu_custom_call.1} parent=1 // pred_check_branch
      %37 = sbr.rel (0) target = $region17
    $region16: #{tpu_custom_call.1} parent=1 // pred_region
      %s39 = ssub.s32 3072, 3072
      %40 = vsyncadd [#allocation6], %s39
      %s41 = sshll.u32 [#allocation5], 4
      %s42 = int_to_ptr.vmem [resolvable:$true] %s41
      %47 = dma.hbm_to_vmem [thread:$0]  %s3, 3072, %s42, [#allocation6], 64, 64, 4
    $region17: #{tpu_custom_call.1} parent=1 // pred_fallthru
      _
    // Predicated region
    $region18: #{tpu_custom_call.1} parent=1 // pred_check
      _
    $region19: #{tpu_custom_call.1} parent=1 // pred_check_branch
      %49 = sbr.rel (0) target = $region21
    $region20: #{tpu_custom_call.1} parent=1 // pred_region
      %s51 = ssub.s32 3072, 3072
      %52 = vsyncadd [#allocation6], %s51
      %s53 = sshll.u32 [#allocation7], 4
      %s54 = int_to_ptr.vmem [resolvable:$true] %s53
      %59 = dma.hbm_to_vmem [thread:$0]  %s4, 3072, %s54, [#allocation6], 64, 64, 4
    $region21: #{tpu_custom_call.1} parent=1 // pred_fallthru
      _
    // Predicated region
    $region22: #{tpu_custom_call.1} parent=1 // pred_check
      _
    $region23: #{tpu_custom_call.1} parent=1 // pred_check_branch
      %61 = sbr.rel (0) target = $region25
    $region24: #{tpu_custom_call.1} parent=1 // pred_region
      %s63 = ssub.s32 3072, 3072
      %64 = vsyncadd [#allocation9], %s63
      %s65 = sshll.u32 [#allocation8], 4
      %s66 = int_to_ptr.vmem [resolvable:$true] %s65
      %71 = dma.hbm_to_vmem [thread:$0]  %s5, 3072, %s66, [#allocation9], 64, 64, 4
    $region25: #{tpu_custom_call.1} parent=1 // pred_fallthru
      _
    // Predicated region
    $region26: #{tpu_custom_call.1} parent=1 // pred_check
      _
    $region27: #{tpu_custom_call.1} parent=1 // pred_check_branch
      %73 = sbr.rel (0) target = $region29
    $region28: #{tpu_custom_call.1} parent=1 // pred_region
      _
    $region29: #{tpu_custom_call.1} parent=1 // pred_fallthru
      _
    // Predicated region
    $region30: #{tpu_custom_call.1} parent=1 // pred_check
      _
    $region31: #{tpu_custom_call.1} parent=1 // pred_check_branch
      %75 = sbr.rel (0) target = $region33
    $region32: #{tpu_custom_call.1} parent=1 // pred_region
      %s77 = ssub.s32 32, 32
      %78 = vsyncadd [#allocation9], %s77
      %s80 = sshll.u32 [#allocation10], 4
      %s81 = int_to_ptr.vmem [resolvable:$true] %s80
      %83 = dma.hbm_to_vmem [thread:$0]  %s7, 32, %s81, [#allocation9]
    $region33: #{tpu_custom_call.1} parent=1 // pred_fallthru
      _
    // Predicated region
    $region34: #{tpu_custom_call.1} parent=1 // pred_check
      _
    $region35: #{tpu_custom_call.1} parent=1 // pred_check_branch
      %85 = sbr.rel (0) target = $region37
    $region36: #{tpu_custom_call.1} parent=1 // pred_region
      %s87 = ssub.s32 32, 32
      %88 = vsyncadd [#allocation12], %s87
      %s90 = sshll.u32 [#allocation11], 4
      %s91 = int_to_ptr.vmem [resolvable:$true] %s90
      %93 = dma.hbm_to_vmem [thread:$0]  %s8, 32, %s91, [#allocation12]
    $region37: #{tpu_custom_call.1} parent=1 // pred_fallthru
      _
    // Predicated region
    $region38: #{tpu_custom_call.1} parent=1 // pred_check
      _
    $region39: #{tpu_custom_call.1} parent=1 // pred_check_branch
      %95 = sbr.rel (0) target = $region41
    $region40: #{tpu_custom_call.1} parent=1 // pred_region
      _
    $region41: #{tpu_custom_call.1} parent=1 // pred_fallthru
      _
    // Predicated region
    $region42: #{tpu_custom_call.1} parent=1 // pred_check
      _
    $region43: #{tpu_custom_call.1} parent=1 // pred_check_branch
      %97 = sbr.rel (0) target = $region45
    $region44: #{tpu_custom_call.1} parent=1 // pred_region
      %98 = dma.done [#allocation3], 512
    $region45: #{tpu_custom_call.1} parent=1 // pred_fallthru
      _
    // Predicated region
    $region46: #{tpu_custom_call.1} parent=1 // pred_check
      _
    $region47: #{tpu_custom_call.1} parent=1 // pred_check_branch
      %100 = sbr.rel (0) target = $region49
    $region48: #{tpu_custom_call.1} parent=1 // pred_region
      %101 = dma.done [#allocation6], 3072
    $region49: #{tpu_custom_call.1} parent=1 // pred_fallthru
      _
    // Predicated region
    $region50: #{tpu_custom_call.1} parent=1 // pred_check
      _
    $region51: #{tpu_custom_call.1} parent=1 // pred_check_branch
      %103 = sbr.rel (0) target = $region53
    $region52: #{tpu_custom_call.1} parent=1 // pred_region
      %104 = dma.done [#allocation6], 3072
    $region53: #{tpu_custom_call.1} parent=1 // pred_fallthru
      _
    // Predicated region
    $region54: #{tpu_custom_call.1} parent=1 // pred_check
      _
    $region55: #{tpu_custom_call.1} parent=1 // pred_check_branch
      %106 = sbr.rel (0) target = $region57
    $region56: #{tpu_custom_call.1} parent=1 // pred_region
      %107 = dma.done [#allocation9], 3072
    $region57: #{tpu_custom_call.1} parent=1 // pred_fallthru
      _
    // Predicated region
    $region58: #{tpu_custom_call.1} parent=1 // pred_check
      _
    $region59: #{tpu_custom_call.1} parent=1 // pred_check_branch
      %109 = sbr.rel (0) target = $region61
    $region60: #{tpu_custom_call.1} parent=1 // pred_region
      %110 = dma.done [#allocation9], 32
    $region61: #{tpu_custom_call.1} parent=1 // pred_fallthru
      _
    // Predicated region
    $region62: #{tpu_custom_call.1} parent=1 // pred_check
      _
    $region63: #{tpu_custom_call.1} parent=1 // pred_check_branch
      %112 = sbr.rel (0) target = $region65
    $region64: #{tpu_custom_call.1} parent=1 // pred_region
      %113 = dma.done [#allocation12], 32
    $region65: #{tpu_custom_call.1} parent=1 // pred_fallthru
      _
    %v115 = vld [vmem:[%s0] sm:$0xf]
    %v116 = vld [vmem:[%s0 + $0x4] sm:$0xf]
    %v117 = vld [vmem:[%s1] sm:$0xff]
    %v118 = vld [vmem:[%s1 + $0x8] sm:$0xff]
    %v119 = vld [vmem:[#allocation2] sm:$0xff]
    %v120 = vld [vmem:[#allocation2 + $0x8] sm:$0xff]
    %v121 = vld [vmem:[#allocation2 + $0x10] sm:$0xff]
    %v122 = vld [vmem:[#allocation2 + $0x18] sm:$0xff]
    %v123 = vpack.c.bf16 %v121, %v119
    %v124 = vpack.c.bf16 %v122, %v120
    %v127 = vunpack.c.l.b16 %v117
    %v128 = vunpack.c.h.b16 %v117
    %v129 = vunpack.c.l.b16 %v118
    %v130 = vunpack.c.h.b16 %v118
    %v131 = vpack.c.b16 %v129, %v127
    %v132 = vpack.c.b16 %v130, %v128
    %v135 = vadd.bf16 %v123, %v131
    %v136 = vadd.bf16 %v124, %v132
    %v137 = vld [vmem:[#allocation5] sm:$0xf]
    %v138 = vld [vmem:[#allocation5 + $0x4] sm:$0xf]
    %v139 = vld [vmem:[#allocation5 + $0x8] sm:$0xf]
    %v140 = vld [vmem:[#allocation5 + $0xc] sm:$0xf]
    %v141 = vld [vmem:[#allocation5 + $0x10] sm:$0xf]
    %v142 = vld [vmem:[#allocation5 + $0x14] sm:$0xf]
    %v143 = vld [vmem:[#allocation5 + $0x18] sm:$0xf]
    %v144 = vld [vmem:[#allocation5 + $0x1c] sm:$0xf]
    %v145 = vld [vmem:[#allocation5 + $0x20] sm:$0xf]
    %v146 = vld [vmem:[#allocation5 + $0x24] sm:$0xf]
    %v147 = vld [vmem:[#allocation5 + $0x28] sm:$0xf]
    %v148 = vld [vmem:[#allocation5 + $0x2c] sm:$0xf]
    %v149 = vld [vmem:[#allocation5 + $0x30] sm:$0xf]
    %v150 = vld [vmem:[#allocation5 + $0x34] sm:$0xf]
    %v151 = vld [vmem:[#allocation5 + $0x38] sm:$0xf]
    %v152 = vld [vmem:[#allocation5 + $0x3c] sm:$0xf]
    %s153 = scalar_lea.vmem [#allocation5], 64
    %v154 = vld [vmem:[%s153] sm:$0xf]
    %v155 = vld [vmem:[%s153 + $0x4] sm:$0xf]
    %v156 = vld [vmem:[%s153 + $0x8] sm:$0xf]
    %v157 = vld [vmem:[%s153 + $0xc] sm:$0xf]
    %v158 = vld [vmem:[%s153 + $0x10] sm:$0xf]
    %v159 = vld [vmem:[%s153 + $0x14] sm:$0xf]
    %v160 = vld [vmem:[%s153 + $0x18] sm:$0xf]
    %v161 = vld [vmem:[%s153 + $0x1c] sm:$0xf]
    %v162 = vld [vmem:[%s153 + $0x20] sm:$0xf]
    %v163 = vld [vmem:[%s153 + $0x24] sm:$0xf]
    %v164 = vld [vmem:[%s153 + $0x28] sm:$0xf]
    %v165 = vld [vmem:[%s153 + $0x2c] sm:$0xf]
    %v166 = vld [vmem:[%s153 + $0x30] sm:$0xf]
    %v167 = vld [vmem:[%s153 + $0x34] sm:$0xf]
    %v168 = vld [vmem:[%s153 + $0x38] sm:$0xf]
    %v169 = vld [vmem:[%s153 + $0x3c] sm:$0xf]
    %s170 = scalar_lea.vmem [#allocation5], 128
    %v171 = vld [vmem:[%s170] sm:$0xf]
    %v172 = vld [vmem:[%s170 + $0x4] sm:$0xf]
    %v173 = vld [vmem:[%s170 + $0x8] sm:$0xf]
    %v174 = vld [vmem:[%s170 + $0xc] sm:$0xf]
    %v175 = vld [vmem:[%s170 + $0x10] sm:$0xf]
    %v176 = vld [vmem:[%s170 + $0x14] sm:$0xf]
    %v177 = vld [vmem:[%s170 + $0x18] sm:$0xf]
    %v178 = vld [vmem:[%s170 + $0x1c] sm:$0xf]
    %v179 = vld [vmem:[%s170 + $0x20] sm:$0xf]
    %v180 = vld [vmem:[%s170 + $0x24] sm:$0xf]
    %v181 = vld [vmem:[%s170 + $0x28] sm:$0xf]
    %v182 = vld [vmem:[%s170 + $0x2c] sm:$0xf]
    %v183 = vld [vmem:[%s170 + $0x30] sm:$0xf]
    %v184 = vld [vmem:[%s170 + $0x34] sm:$0xf]
    %v185 = vld [vmem:[%s170 + $0x38] sm:$0xf]
    %v186 = vld [vmem:[%s170 + $0x3c] sm:$0xf]
    %v187 = vld [vmem:[#allocation7] sm:$0xf]
    %v188 = vld [vmem:[#allocation7 + $0x4] sm:$0xf]
    %v189 = vld [vmem:[#allocation7 + $0x8] sm:$0xf]
    %v190 = vld [vmem:[#allocation7 + $0xc] sm:$0xf]
    %v191 = vld [vmem:[#allocation7 + $0x10] sm:$0xf]
    %v192 = vld [vmem:[#allocation7 + $0x14] sm:$0xf]
    %v193 = vld [vmem:[#allocation7 + $0x18] sm:$0xf]
    %v194 = vld [vmem:[#allocation7 + $0x1c] sm:$0xf]
    %v195 = vld [vmem:[#allocation7 + $0x20] sm:$0xf]
    %v196 = vld [vmem:[#allocation7 + $0x24] sm:$0xf]
    %v197 = vld [vmem:[#allocation7 + $0x28] sm:$0xf]
    %v198 = vld [vmem:[#allocation7 + $0x2c] sm:$0xf]
    %v199 = vld [vmem:[#allocation7 + $0x30] sm:$0xf]
    %v200 = vld [vmem:[#allocation7 + $0x34] sm:$0xf]
    %v201 = vld [vmem:[#allocation7 + $0x38] sm:$0xf]
    %v202 = vld [vmem:[#allocation7 + $0x3c] sm:$0xf]
    %s203 = scalar_lea.vmem [#allocation7], 64
    %v204 = vld [vmem:[%s203] sm:$0xf]
    %v205 = vld [vmem:[%s203 + $0x4] sm:$0xf]
    %v206 = vld [vmem:[%s203 + $0x8] sm:$0xf]
    %v207 = vld [vmem:[%s203 + $0xc] sm:$0xf]
    %v208 = vld [vmem:[%s203 + $0x10] sm:$0xf]
    %v209 = vld [vmem:[%s203 + $0x14] sm:$0xf]
    %v210 = vld [vmem:[%s203 + $0x18] sm:$0xf]
    %v211 = vld [vmem:[%s203 + $0x1c] sm:$0xf]
    %v212 = vld [vmem:[%s203 + $0x20] sm:$0xf]
    %v213 = vld [vmem:[%s203 + $0x24] sm:$0xf]
    %v214 = vld [vmem:[%s203 + $0x28] sm:$0xf]
    %v215 = vld [vmem:[%s203 + $0x2c] sm:$0xf]
    %v216 = vld [vmem:[%s203 + $0x30] sm:$0xf]
    %v217 = vld [vmem:[%s203 + $0x34] sm:$0xf]
    %v218 = vld [vmem:[%s203 + $0x38] sm:$0xf]
    %v219 = vld [vmem:[%s203 + $0x3c] sm:$0xf]
    %s220 = scalar_lea.vmem [#allocation7], 128
    %v221 = vld [vmem:[%s220] sm:$0xf]
    %v222 = vld [vmem:[%s220 + $0x4] sm:$0xf]
    %v223 = vld [vmem:[%s220 + $0x8] sm:$0xf]
    %v224 = vld [vmem:[%s220 + $0xc] sm:$0xf]
    %v225 = vld [vmem:[%s220 + $0x10] sm:$0xf]
    %v226 = vld [vmem:[%s220 + $0x14] sm:$0xf]
    %v227 = vld [vmem:[%s220 + $0x18] sm:$0xf]
    %v228 = vld [vmem:[%s220 + $0x1c] sm:$0xf]
    %v229 = vld [vmem:[%s220 + $0x20] sm:$0xf]
    %v230 = vld [vmem:[%s220 + $0x24] sm:$0xf]
    %v231 = vld [vmem:[%s220 + $0x28] sm:$0xf]
    %v232 = vld [vmem:[%s220 + $0x2c] sm:$0xf]
    %v233 = vld [vmem:[%s220 + $0x30] sm:$0xf]
    %v234 = vld [vmem:[%s220 + $0x34] sm:$0xf]
    %v235 = vld [vmem:[%s220 + $0x38] sm:$0xf]
    %v236 = vld [vmem:[%s220 + $0x3c] sm:$0xf]
    %v237 = vld [vmem:[#allocation8] sm:$0xf]
    %v238 = vld [vmem:[#allocation8 + $0x4] sm:$0xf]
    %v239 = vld [vmem:[#allocation8 + $0x8] sm:$0xf]
    %v240 = vld [vmem:[#allocation8 + $0xc] sm:$0xf]
    %v241 = vld [vmem:[#allocation8 + $0x10] sm:$0xf]
    %v242 = vld [vmem:[#allocation8 + $0x14] sm:$0xf]
    %v243 = vld [vmem:[#allocation8 + $0x18] sm:$0xf]
    %v244 = vld [vmem:[#allocation8 + $0x1c] sm:$0xf]
    %v245 = vld [vmem:[#allocation8 + $0x20] sm:$0xf]
    %v246 = vld [vmem:[#allocation8 + $0x24] sm:$0xf]
    %v247 = vld [vmem:[#allocation8 + $0x28] sm:$0xf]
    %v248 = vld [vmem:[#allocation8 + $0x2c] sm:$0xf]
    %v249 = vld [vmem:[#allocation8 + $0x30] sm:$0xf]
    %v250 = vld [vmem:[#allocation8 + $0x34] sm:$0xf]
    %v251 = vld [vmem:[#allocation8 + $0x38] sm:$0xf]
    %v252 = vld [vmem:[#allocation8 + $0x3c] sm:$0xf]
    %s253 = scalar_lea.vmem [#allocation8], 64
    %v254 = vld [vmem:[%s253] sm:$0xf]
    %v255 = vld [vmem:[%s253 + $0x4] sm:$0xf]
    %v256 = vld [vmem:[%s253 + $0x8] sm:$0xf]
    %v257 = vld [vmem:[%s253 + $0xc] sm:$0xf]
    %v258 = vld [vmem:[%s253 + $0x10] sm:$0xf]
    %v259 = vld [vmem:[%s253 + $0x14] sm:$0xf]
    %v260 = vld [vmem:[%s253 + $0x18] sm:$0xf]
    %v261 = vld [vmem:[%s253 + $0x1c] sm:$0xf]
    %v262 = vld [vmem:[%s253 + $0x20] sm:$0xf]
    %v263 = vld [vmem:[%s253 + $0x24] sm:$0xf]
    %v264 = vld [vmem:[%s253 + $0x28] sm:$0xf]
    %v265 = vld [vmem:[%s253 + $0x2c] sm:$0xf]
    %v266 = vld [vmem:[%s253 + $0x30] sm:$0xf]
    %v267 = vld [vmem:[%s253 + $0x34] sm:$0xf]
    %v268 = vld [vmem:[%s253 + $0x38] sm:$0xf]
    %v269 = vld [vmem:[%s253 + $0x3c] sm:$0xf]
    %s270 = scalar_lea.vmem [#allocation8], 128
    %v271 = vld [vmem:[%s270] sm:$0xf]
    %v272 = vld [vmem:[%s270 + $0x4] sm:$0xf]
    %v273 = vld [vmem:[%s270 + $0x8] sm:$0xf]
    %v274 = vld [vmem:[%s270 + $0xc] sm:$0xf]
    %v275 = vld [vmem:[%s270 + $0x10] sm:$0xf]
    %v276 = vld [vmem:[%s270 + $0x14] sm:$0xf]
    %v277 = vld [vmem:[%s270 + $0x18] sm:$0xf]
    %v278 = vld [vmem:[%s270 + $0x1c] sm:$0xf]
    %v279 = vld [vmem:[%s270 + $0x20] sm:$0xf]
    %v280 = vld [vmem:[%s270 + $0x24] sm:$0xf]
    %v281 = vld [vmem:[%s270 + $0x28] sm:$0xf]
    %v282 = vld [vmem:[%s270 + $0x2c] sm:$0xf]
    %v283 = vld [vmem:[%s270 + $0x30] sm:$0xf]
    %v284 = vld [vmem:[%s270 + $0x34] sm:$0xf]
    %v285 = vld [vmem:[%s270 + $0x38] sm:$0xf]
    %v286 = vld [vmem:[%s270 + $0x3c] sm:$0xf]
    %v289 = vunpack.c.l.b16 %v115
    %v290 = vunpack.c.l.b16 %v116
    %v291 = vpack.c.b16 %v290, %v289
    %vm292 = vcmask 130048
    %v294 = vsel %vm292, %v291, 0
    %296 = vmatprep.subr.bf16.mxu0 %v136
    %297 = vmatpush1.bf16.msra.mxu0 %v135
    %298 = vmatprep.subr.bf16.mxu0 0
    %299 = vmatpush1.bf16.msra.mxu0 0
    %300 = vmatprep.subr.bf16.mxu0 0
    %301 = vmatpush1.bf16.msra.mxu0 0
    %302 = vmatprep.subr.bf16.mxu0 0
    %303 = vmatpush1.bf16.msra.mxu0 0
    %304 = vmatprep.subr.bf16.mxu0 0
    %305 = vmatpush1.bf16.msra.mxu0 0
    %306 = vmatprep.subr.bf16.mxu0 0
    %307 = vmatpush1.bf16.msra.mxu0 0
    %308 = vmatprep.subr.bf16.mxu0 0
    %309 = vmatpush1.bf16.msra.mxu0 0
    %310 = vmatprep.subr.bf16.mxu0 0
    %311 = vmatpush1.bf16.msra.mxu0 0
    %312 = vmatprep.subr.bf16.mxu0 0
    %313 = vmatpush1.bf16.msra.mxu0 0
    %314 = vmatprep.subr.bf16.mxu0 0
    %315 = vmatpush1.bf16.msra.mxu0 0
    %316 = vmatprep.subr.bf16.mxu0 0
    %317 = vmatpush1.bf16.msra.mxu0 0
    %318 = vmatprep.subr.bf16.mxu0 0
    %319 = vmatpush1.bf16.msra.mxu0 0
    %320 = vmatprep.subr.bf16.mxu0 0
    %321 = vmatpush1.bf16.msra.mxu0 0
    %322 = vmatprep.subr.bf16.mxu0 0
    %323 = vmatpush1.bf16.msra.mxu0 0
    %324 = vmatprep.subr.bf16.mxu0 0
    %325 = vmatpush1.bf16.msra.mxu0 0
    %326 = vmatprep.subr.bf16.mxu0 0
    %327 = vmatpush1.bf16.msra.mxu0 0
    %328 = vmatprep.mubr.bf16.mxu0 0
    %329 = vmatmul.mubr.bf16.gmra.mrb[0].mxu0 %v294
    %v330 = vpop.f32.mrb[0].mxu0
    %v331 = vadd.f32 0.0, %v330
    %v332 = vpop.f32.mrb[0].mxu0
    %v333 = vadd.f32 0.0, %v332
    %v334 = vpop.f32.mrb[0].mxu0
    %v335 = vadd.f32 0.0, %v334
    %v336 = vpop.f32.mrb[0].mxu0
    %v337 = vadd.f32 0.0, %v336
    %338 = vdwg.mxu0
    %v339 = vpack.c.bf16 %v335, %v331
    %v340 = vpack.c.bf16 %v337, %v333
    %v357 = vunpack.c.l.b16 %v154
    %v358 = vunpack.c.l.b16 %v155
    %v359 = vunpack.c.l.b16 %v156
    %v360 = vunpack.c.l.b16 %v157
    %v361 = vunpack.c.l.b16 %v158
    %v362 = vunpack.c.l.b16 %v159
    %v363 = vunpack.c.l.b16 %v160
    %v364 = vunpack.c.l.b16 %v161
    %v365 = vunpack.c.l.b16 %v162
    %v366 = vunpack.c.l.b16 %v163
    %v367 = vunpack.c.l.b16 %v164
    %v368 = vunpack.c.l.b16 %v165
    %v369 = vunpack.c.l.b16 %v166
    %v370 = vunpack.c.l.b16 %v167
    %v371 = vunpack.c.l.b16 %v168
    %v372 = vunpack.c.l.b16 %v169
    %v373 = vpack.c.b16 %v358, %v357
    %v374 = vpack.c.b16 %v360, %v359
    %v375 = vpack.c.b16 %v362, %v361
    %v376 = vpack.c.b16 %v364, %v363
    %v377 = vpack.c.b16 %v366, %v365
    %v378 = vpack.c.b16 %v368, %v367
    %v379 = vpack.c.b16 %v370, %v369
    %v380 = vpack.c.b16 %v372, %v371
    %389 = vmatprep.subr.bf16.mxu0 0
    %390 = vmatpush1.bf16.msra.mxu0 %v373
    %391 = vmatprep.subr.bf16.mxu0 0
    %392 = vmatpush1.bf16.msra.mxu0 %v374
    %393 = vmatprep.subr.bf16.mxu0 0
    %394 = vmatpush1.bf16.msra.mxu0 %v375
    %395 = vmatprep.subr.bf16.mxu0 0
    %396 = vmatpush1.bf16.msra.mxu0 %v376
    %397 = vmatprep.subr.bf16.mxu0 0
    %398 = vmatpush1.bf16.msra.mxu0 %v377
    %399 = vmatprep.subr.bf16.mxu0 0
    %400 = vmatpush1.bf16.msra.mxu0 %v378
    %401 = vmatprep.subr.bf16.mxu0 0
    %402 = vmatpush1.bf16.msra.mxu0 %v379
    %403 = vmatprep.subr.bf16.mxu0 0
    %404 = vmatpush1.bf16.msra.mxu0 %v380
    %405 = vmatprep.subr.bf16.mxu0 0
    %406 = vmatpush1.bf16.msra.mxu0 0
    %407 = vmatprep.subr.bf16.mxu0 0
    %408 = vmatpush1.bf16.msra.mxu0 0
    %409 = vmatprep.subr.bf16.mxu0 0
    %410 = vmatpush1.bf16.msra.mxu0 0
    %411 = vmatprep.subr.bf16.mxu0 0
    %412 = vmatpush1.bf16.msra.mxu0 0
    %413 = vmatprep.subr.bf16.mxu0 0
    %414 = vmatpush1.bf16.msra.mxu0 0
    %415 = vmatprep.subr.bf16.mxu0 0
    %416 = vmatpush1.bf16.msra.mxu0 0
    %417 = vmatprep.subr.bf16.mxu0 0
    %418 = vmatpush1.bf16.msra.mxu0 0
    %419 = vmatprep.subr.bf16.mxu0 0
    %420 = vmatpush1.bf16.msra.mxu0 0
    %421 = vmatprep.mubr.bf16.mxu0 0
    %422 = vmatmul.mubr.bf16.gmra.mrb[0].mxu0 %v339
    %v423 = vpop.f32.mrb[0].mxu0
    %v424 = vadd.f32 0.0, %v423
    %v425 = vpop.f32.mrb[0].mxu0
    %v426 = vpop.f32.mrb[0].mxu0
    %v427 = vadd.f32 0.0, %v426
    %v428 = vpop.f32.mrb[0].mxu0
    %429 = vdwg.mxu0
    %v446 = vunpack.c.l.b16 %v137
    %v447 = vunpack.c.l.b16 %v138
    %v448 = vunpack.c.l.b16 %v139
    %v449 = vunpack.c.l.b16 %v140
    %v450 = vunpack.c.l.b16 %v141
    %v451 = vunpack.c.l.b16 %v142
    %v452 = vunpack.c.l.b16 %v143
    %v453 = vunpack.c.l.b16 %v144
    %v454 = vunpack.c.l.b16 %v145
    %v455 = vunpack.c.l.b16 %v146
    %v456 = vunpack.c.l.b16 %v147
    %v457 = vunpack.c.l.b16 %v148
    %v458 = vunpack.c.l.b16 %v149
    %v459 = vunpack.c.l.b16 %v150
    %v460 = vunpack.c.l.b16 %v151
    %v461 = vunpack.c.l.b16 %v152
    %v462 = vpack.c.b16 %v447, %v446
    %v463 = vpack.c.b16 %v449, %v448
    %v464 = vpack.c.b16 %v451, %v450
    %v465 = vpack.c.b16 %v453, %v452
    %v466 = vpack.c.b16 %v455, %v454
    %v467 = vpack.c.b16 %v457, %v456
    %v468 = vpack.c.b16 %v459, %v458
    %v469 = vpack.c.b16 %v461, %v460
    %478 = vmatprep.subr.bf16.mxu0 0
    %479 = vmatpush1.bf16.msra.mxu0 %v462
    %480 = vmatprep.subr.bf16.mxu0 0
    %481 = vmatpush1.bf16.msra.mxu0 %v463
    %482 = vmatprep.subr.bf16.mxu0 0
    %483 = vmatpush1.bf16.msra.mxu0 %v464
    %484 = vmatprep.subr.bf16.mxu0 0
    %485 = vmatpush1.bf16.msra.mxu0 %v465
    %486 = vmatprep.subr.bf16.mxu0 0
    %487 = vmatpush1.bf16.msra.mxu0 %v466
    %488 = vmatprep.subr.bf16.mxu0 0
    %489 = vmatpush1.bf16.msra.mxu0 %v467
    %490 = vmatprep.subr.bf16.mxu0 0
    %491 = vmatpush1.bf16.msra.mxu0 %v468
    %492 = vmatprep.subr.bf16.mxu0 0
    %493 = vmatpush1.bf16.msra.mxu0 %v469
    %494 = vmatprep.subr.bf16.mxu0 0
    %495 = vmatpush1.bf16.msra.mxu0 0
    %496 = vmatprep.subr.bf16.mxu0 0
    %497 = vmatpush1.bf16.msra.mxu0 0
    %498 = vmatprep.subr.bf16.mxu0 0
    %499 = vmatpush1.bf16.msra.mxu0 0
    %500 = vmatprep.subr.bf16.mxu0 0
    %501 = vmatpush1.bf16.msra.mxu0 0
    %502 = vmatprep.subr.bf16.mxu0 0
    %503 = vmatpush1.bf16.msra.mxu0 0
    %504 = vmatprep.subr.bf16.mxu0 0
    %505 = vmatpush1.bf16.msra.mxu0 0
    %506 = vmatprep.subr.bf16.mxu0 0
    %507 = vmatpush1.bf16.msra.mxu0 0
    %508 = vmatprep.subr.bf16.mxu0 0
    %509 = vmatpush1.bf16.msra.mxu0 0
    %510 = vmatprep.mubr.bf16.mxu0 0
    %511 = vmatmul.mubr.bf16.gmra.mrb[0].mxu0 %v135
    %v512 = vpop.f32.mrb[0].mxu0
    %v513 = vadd.f32 %v424, %v512
    %v514 = vpop.f32.mrb[0].mxu0
    %v515 = vpop.f32.mrb[0].mxu0
    %v516 = vadd.f32 %v427, %v515
    %v517 = vpop.f32.mrb[0].mxu0
    %518 = vdwg.mxu0
    %519 = vmatprep.subr.bf16.mxu0 0
    %520 = vmatpush1.bf16.msra.mxu0 %v373
    %521 = vmatprep.subr.bf16.mxu0 0
    %522 = vmatpush1.bf16.msra.mxu0 %v374
    %523 = vmatprep.subr.bf16.mxu0 0
    %524 = vmatpush1.bf16.msra.mxu0 %v375
    %525 = vmatprep.subr.bf16.mxu0 0
    %526 = vmatpush1.bf16.msra.mxu0 %v376
    %527 = vmatprep.subr.bf16.mxu0 0
    %528 = vmatpush1.bf16.msra.mxu0 %v377
    %529 = vmatprep.subr.bf16.mxu0 0
    %530 = vmatpush1.bf16.msra.mxu0 %v378
    %531 = vmatprep.subr.bf16.mxu0 0
    %532 = vmatpush1.bf16.msra.mxu0 %v379
    %533 = vmatprep.subr.bf16.mxu0 0
    %534 = vmatpush1.bf16.msra.mxu0 %v380
    %535 = vmatprep.subr.bf16.mxu0 0
    %536 = vmatpush1.bf16.msra.mxu0 0
    %537 = vmatprep.subr.bf16.mxu0 0
    %538 = vmatpush1.bf16.msra.mxu0 0
    %539 = vmatprep.subr.bf16.mxu0 0
    %540 = vmatpush1.bf16.msra.mxu0 0
    %541 = vmatprep.subr.bf16.mxu0 0
    %542 = vmatpush1.bf16.msra.mxu0 0
    %543 = vmatprep.subr.bf16.mxu0 0
    %544 = vmatpush1.bf16.msra.mxu0 0
    %545 = vmatprep.subr.bf16.mxu0 0
    %546 = vmatpush1.bf16.msra.mxu0 0
    %547 = vmatprep.subr.bf16.mxu0 0
    %548 = vmatpush1.bf16.msra.mxu0 0
    %549 = vmatprep.subr.bf16.mxu0 0
    %550 = vmatpush1.bf16.msra.mxu0 0
    %551 = vmatprep.mubr.bf16.mxu0 0
    %552 = vmatmul.mubr.bf16.gmra.mrb[0].mxu0 %v340
    %v553 = vpop.f32.mrb[0].mxu0
    %v554 = vadd.f32 0.0, %v553
    %v555 = vpop.f32.mrb[0].mxu0
    %v556 = vpop.f32.mrb[0].mxu0
    %v557 = vadd.f32 0.0, %v556
    %v558 = vpop.f32.mrb[0].mxu0
    %559 = vdwg.mxu0
    %560 = vmatprep.subr.bf16.mxu0 0
    %561 = vmatpush1.bf16.msra.mxu0 %v462
    %562 = vmatprep.subr.bf16.mxu0 0
    %563 = vmatpush1.bf16.msra.mxu0 %v463
    %564 = vmatprep.subr.bf16.mxu0 0
    %565 = vmatpush1.bf16.msra.mxu0 %v464
    %566 = vmatprep.subr.bf16.mxu0 0
    %567 = vmatpush1.bf16.msra.mxu0 %v465
    %568 = vmatprep.subr.bf16.mxu0 0
    %569 = vmatpush1.bf16.msra.mxu0 %v466
    %570 = vmatprep.subr.bf16.mxu0 0
    %571 = vmatpush1.bf16.msra.mxu0 %v467
    %572 = vmatprep.subr.bf16.mxu0 0
    %573 = vmatpush1.bf16.msra.mxu0 %v468
    %574 = vmatprep.subr.bf16.mxu0 0
    %575 = vmatpush1.bf16.msra.mxu0 %v469
    %576 = vmatprep.subr.bf16.mxu0 0
    %577 = vmatpush1.bf16.msra.mxu0 0
    %578 = vmatprep.subr.bf16.mxu0 0
    %579 = vmatpush1.bf16.msra.mxu0 0
    %580 = vmatprep.subr.bf16.mxu0 0
    %581 = vmatpush1.bf16.msra.mxu0 0
    %582 = vmatprep.subr.bf16.mxu0 0
    %583 = vmatpush1.bf16.msra.mxu0 0
    %584 = vmatprep.subr.bf16.mxu0 0
    %585 = vmatpush1.bf16.msra.mxu0 0
    %586 = vmatprep.subr.bf16.mxu0 0
    %587 = vmatpush1.bf16.msra.mxu0 0
    %588 = vmatprep.subr.bf16.mxu0 0
    %589 = vmatpush1.bf16.msra.mxu0 0
    %590 = vmatprep.subr.bf16.mxu0 0
    %591 = vmatpush1.bf16.msra.mxu0 0
    %592 = vmatprep.mubr.bf16.mxu0 0
    %593 = vmatmul.mubr.bf16.gmra.mrb[0].mxu0 %v136
    %v594 = vpop.f32.mrb[0].mxu0
    %v595 = vadd.f32 %v554, %v594
    %v596 = vpop.f32.mrb[0].mxu0
    %v597 = vpop.f32.mrb[0].mxu0
    %v598 = vadd.f32 %v557, %v597
    %v599 = vpop.f32.mrb[0].mxu0
    %600 = vdwg.mxu0
    %v617 = vunpack.c.l.b16 %v204
    %v618 = vunpack.c.l.b16 %v205
    %v619 = vunpack.c.l.b16 %v206
    %v620 = vunpack.c.l.b16 %v207
    %v621 = vunpack.c.l.b16 %v208
    %v622 = vunpack.c.l.b16 %v209
    %v623 = vunpack.c.l.b16 %v210
    %v624 = vunpack.c.l.b16 %v211
    %v625 = vunpack.c.l.b16 %v212
    %v626 = vunpack.c.l.b16 %v213
    %v627 = vunpack.c.l.b16 %v214
    %v628 = vunpack.c.l.b16 %v215
    %v629 = vunpack.c.l.b16 %v216
    %v630 = vunpack.c.l.b16 %v217
    %v631 = vunpack.c.l.b16 %v218
    %v632 = vunpack.c.l.b16 %v219
    %v633 = vpack.c.b16 %v618, %v617
    %v634 = vpack.c.b16 %v620, %v619
    %v635 = vpack.c.b16 %v622, %v621
    %v636 = vpack.c.b16 %v624, %v623
    %v637 = vpack.c.b16 %v626, %v625
    %v638 = vpack.c.b16 %v628, %v627
    %v639 = vpack.c.b16 %v630, %v629
    %v640 = vpack.c.b16 %v632, %v631
    %649 = vmatprep.subr.bf16.mxu0 0
    %650 = vmatpush1.bf16.msra.mxu0 %v633
    %651 = vmatprep.subr.bf16.mxu0 0
    %652 = vmatpush1.bf16.msra.mxu0 %v634
    %653 = vmatprep.subr.bf16.mxu0 0
    %654 = vmatpush1.bf16.msra.mxu0 %v635
    %655 = vmatprep.subr.bf16.mxu0 0
    %656 = vmatpush1.bf16.msra.mxu0 %v636
    %657 = vmatprep.subr.bf16.mxu0 0
    %658 = vmatpush1.bf16.msra.mxu0 %v637
    %659 = vmatprep.subr.bf16.mxu0 0
    %660 = vmatpush1.bf16.msra.mxu0 %v638
    %661 = vmatprep.subr.bf16.mxu0 0
    %662 = vmatpush1.bf16.msra.mxu0 %v639
    %663 = vmatprep.subr.bf16.mxu0 0
    %664 = vmatpush1.bf16.msra.mxu0 %v640
    %665 = vmatprep.subr.bf16.mxu0 0
    %666 = vmatpush1.bf16.msra.mxu0 0
    %667 = vmatprep.subr.bf16.mxu0 0
    %668 = vmatpush1.bf16.msra.mxu0 0
    %669 = vmatprep.subr.bf16.mxu0 0
    %670 = vmatpush1.bf16.msra.mxu0 0
    %671 = vmatprep.subr.bf16.mxu0 0
    %672 = vmatpush1.bf16.msra.mxu0 0
    %673 = vmatprep.subr.bf16.mxu0 0
    %674 = vmatpush1.bf16.msra.mxu0 0
    %675 = vmatprep.subr.bf16.mxu0 0
    %676 = vmatpush1.bf16.msra.mxu0 0
    %677 = vmatprep.subr.bf16.mxu0 0
    %678 = vmatpush1.bf16.msra.mxu0 0
    %679 = vmatprep.subr.bf16.mxu0 0
    %680 = vmatpush1.bf16.msra.mxu0 0
    %681 = vmatprep.mubr.bf16.mxu0 0
    %682 = vmatmul.mubr.bf16.gmra.mrb[0].mxu0 %v339
    %v683 = vpop.f32.mrb[0].mxu0
    %v684 = vadd.f32 0.0, %v683
    %v685 = vpop.f32.mrb[0].mxu0
    %v686 = vpop.f32.mrb[0].mxu0
    %v687 = vadd.f32 0.0, %v686
    %v688 = vpop.f32.mrb[0].mxu0
    %689 = vdwg.mxu0
    %v706 = vunpack.c.l.b16 %v187
    %v707 = vunpack.c.l.b16 %v188
    %v708 = vunpack.c.l.b16 %v189
    %v709 = vunpack.c.l.b16 %v190
    %v710 = vunpack.c.l.b16 %v191
    %v711 = vunpack.c.l.b16 %v192
    %v712 = vunpack.c.l.b16 %v193
    %v713 = vunpack.c.l.b16 %v194
    %v714 = vunpack.c.l.b16 %v195
    %v715 = vunpack.c.l.b16 %v196
    %v716 = vunpack.c.l.b16 %v197
    %v717 = vunpack.c.l.b16 %v198
    %v718 = vunpack.c.l.b16 %v199
    %v719 = vunpack.c.l.b16 %v200
    %v720 = vunpack.c.l.b16 %v201
    %v721 = vunpack.c.l.b16 %v202
    %v722 = vpack.c.b16 %v707, %v706
    %v723 = vpack.c.b16 %v709, %v708
    %v724 = vpack.c.b16 %v711, %v710
    %v725 = vpack.c.b16 %v713, %v712
    %v726 = vpack.c.b16 %v715, %v714
    %v727 = vpack.c.b16 %v717, %v716
    %v728 = vpack.c.b16 %v719, %v718
    %v729 = vpack.c.b16 %v721, %v720
    %738 = vmatprep.subr.bf16.mxu0 0
    %739 = vmatpush1.bf16.msra.mxu0 %v722
    %740 = vmatprep.subr.bf16.mxu0 0
    %741 = vmatpush1.bf16.msra.mxu0 %v723
    %742 = vmatprep.subr.bf16.mxu0 0
    %743 = vmatpush1.bf16.msra.mxu0 %v724
    %744 = vmatprep.subr.bf16.mxu0 0
    %745 = vmatpush1.bf16.msra.mxu0 %v725
    %746 = vmatprep.subr.bf16.mxu0 0
    %747 = vmatpush1.bf16.msra.mxu0 %v726
    %748 = vmatprep.subr.bf16.mxu0 0
    %749 = vmatpush1.bf16.msra.mxu0 %v727
    %750 = vmatprep.subr.bf16.mxu0 0
    %751 = vmatpush1.bf16.msra.mxu0 %v728
    %752 = vmatprep.subr.bf16.mxu0 0
    %753 = vmatpush1.bf16.msra.mxu0 %v729
    %754 = vmatprep.subr.bf16.mxu0 0
    %755 = vmatpush1.bf16.msra.mxu0 0
    %756 = vmatprep.subr.bf16.mxu0 0
    %757 = vmatpush1.bf16.msra.mxu0 0
    %758 = vmatprep.subr.bf16.mxu0 0
    %759 = vmatpush1.bf16.msra.mxu0 0
    %760 = vmatprep.subr.bf16.mxu0 0
    %761 = vmatpush1.bf16.msra.mxu0 0
    %762 = vmatprep.subr.bf16.mxu0 0
    %763 = vmatpush1.bf16.msra.mxu0 0
    %764 = vmatprep.subr.bf16.mxu0 0
    %765 = vmatpush1.bf16.msra.mxu0 0
    %766 = vmatprep.subr.bf16.mxu0 0
    %767 = vmatpush1.bf16.msra.mxu0 0
    %768 = vmatprep.subr.bf16.mxu0 0
    %769 = vmatpush1.bf16.msra.mxu0 0
    %770 = vmatprep.mubr.bf16.mxu0 0
    %771 = vmatmul.mubr.bf16.gmra.mrb[0].mxu0 %v135
    %v772 = vpop.f32.mrb[0].mxu0
    %v773 = vadd.f32 %v684, %v772
    %v774 = vpop.f32.mrb[0].mxu0
    %v775 = vpop.f32.mrb[0].mxu0
    %v776 = vadd.f32 %v687, %v775
    %v777 = vpop.f32.mrb[0].mxu0
    %778 = vdwg.mxu0
    %779 = vmatprep.subr.bf16.mxu0 0
    %780 = vmatpush1.bf16.msra.mxu0 %v633
    %781 = vmatprep.subr.bf16.mxu0 0
    %782 = vmatpush1.bf16.msra.mxu0 %v634
    %783 = vmatprep.subr.bf16.mxu0 0
    %784 = vmatpush1.bf16.msra.mxu0 %v635
    %785 = vmatprep.subr.bf16.mxu0 0
    %786 = vmatpush1.bf16.msra.mxu0 %v636
    %787 = vmatprep.subr.bf16.mxu0 0
    %788 = vmatpush1.bf16.msra.mxu0 %v637
    %789 = vmatprep.subr.bf16.mxu0 0
    %790 = vmatpush1.bf16.msra.mxu0 %v638
    %791 = vmatprep.subr.bf16.mxu0 0
    %792 = vmatpush1.bf16.msra.mxu0 %v639
    %793 = vmatprep.subr.bf16.mxu0 0
    %794 = vmatpush1.bf16.msra.mxu0 %v640
    %795 = vmatprep.subr.bf16.mxu0 0
    %796 = vmatpush1.bf16.msra.mxu0 0
    %797 = vmatprep.subr.bf16.mxu0 0
    %798 = vmatpush1.bf16.msra.mxu0 0
    %799 = vmatprep.subr.bf16.mxu0 0
    %800 = vmatpush1.bf16.msra.mxu0 0
    %801 = vmatprep.subr.bf16.mxu0 0
    %802 = vmatpush1.bf16.msra.mxu0 0
    %803 = vmatprep.subr.bf16.mxu0 0
    %804 = vmatpush1.bf16.msra.mxu0 0
    %805 = vmatprep.subr.bf16.mxu0 0
    %806 = vmatpush1.bf16.msra.mxu0 0
    %807 = vmatprep.subr.bf16.mxu0 0
    %808 = vmatpush1.bf16.msra.mxu0 0
    %809 = vmatprep.subr.bf16.mxu0 0
    %810 = vmatpush1.bf16.msra.mxu0 0
    %811 = vmatprep.mubr.bf16.mxu0 0
    %812 = vmatmul.mubr.bf16.gmra.mrb[0].mxu0 %v340
    %v813 = vpop.f32.mrb[0].mxu0
    %v814 = vadd.f32 0.0, %v813
    %v815 = vpop.f32.mrb[0].mxu0
    %v816 = vpop.f32.mrb[0].mxu0
    %v817 = vadd.f32 0.0, %v816
    %v818 = vpop.f32.mrb[0].mxu0
    %819 = vdwg.mxu0
    %820 = vmatprep.subr.bf16.mxu0 0
    %821 = vmatpush1.bf16.msra.mxu0 %v722
    %822 = vmatprep.subr.bf16.mxu0 0
    %823 = vmatpush1.bf16.msra.mxu0 %v723
    %824 = vmatprep.subr.bf16.mxu0 0
    %825 = vmatpush1.bf16.msra.mxu0 %v724
    %826 = vmatprep.subr.bf16.mxu0 0
    %827 = vmatpush1.bf16.msra.mxu0 %v725
    %828 = vmatprep.subr.bf16.mxu0 0
    %829 = vmatpush1.bf16.msra.mxu0 %v726
    %830 = vmatprep.subr.bf16.mxu0 0
    %831 = vmatpush1.bf16.msra.mxu0 %v727
    %832 = vmatprep.subr.bf16.mxu0 0
    %833 = vmatpush1.bf16.msra.mxu0 %v728
    %834 = vmatprep.subr.bf16.mxu0 0
    %835 = vmatpush1.bf16.msra.mxu0 %v729
    %836 = vmatprep.subr.bf16.mxu0 0
    %837 = vmatpush1.bf16.msra.mxu0 0
    %838 = vmatprep.subr.bf16.mxu0 0
    %839 = vmatpush1.bf16.msra.mxu0 0
    %840 = vmatprep.subr.bf16.mxu0 0
    %841 = vmatpush1.bf16.msra.mxu0 0
    %842 = vmatprep.subr.bf16.mxu0 0
    %843 = vmatpush1.bf16.msra.mxu0 0
    %844 = vmatprep.subr.bf16.mxu0 0
    %845 = vmatpush1.bf16.msra.mxu0 0
    %846 = vmatprep.subr.bf16.mxu0 0
    %847 = vmatpush1.bf16.msra.mxu0 0
    %848 = vmatprep.subr.bf16.mxu0 0
    %849 = vmatpush1.bf16.msra.mxu0 0
    %850 = vmatprep.subr.bf16.mxu0 0
    %851 = vmatpush1.bf16.msra.mxu0 0
    %852 = vmatprep.mubr.bf16.mxu0 0
    %853 = vmatmul.mubr.bf16.gmra.mrb[0].mxu0 %v136
    %v854 = vpop.f32.mrb[0].mxu0
    %v855 = vadd.f32 %v814, %v854
    %v856 = vpop.f32.mrb[0].mxu0
    %v857 = vpop.f32.mrb[0].mxu0
    %v858 = vadd.f32 %v817, %v857
    %v859 = vpop.f32.mrb[0].mxu0
    %860 = vdwg.mxu0
    %v861 = vunpack.c.l.bf16 %v135
    %v862 = vunpack.c.l.bf16 %v136
    %v863 = vunpack.c.h.bf16 %v135
    %v864 = vunpack.c.h.bf16 %v136
    %865 = vmatprep.subr.bf16.mxu0 %v340
    %866 = vmatpush1.bf16.msra.mxu0 %v339
    %867 = vmatprep.subr.bf16.mxu0 0
    %868 = vmatpush1.bf16.msra.mxu0 0
    %869 = vmatprep.subr.bf16.mxu0 0
    %870 = vmatpush1.bf16.msra.mxu0 0
    %871 = vmatprep.subr.bf16.mxu0 0
    %872 = vmatpush1.bf16.msra.mxu0 0
    %873 = vmatprep.subr.bf16.mxu0 0
    %874 = vmatpush1.bf16.msra.mxu0 0
    %875 = vmatprep.subr.bf16.mxu0 0
    %876 = vmatpush1.bf16.msra.mxu0 0
    %877 = vmatprep.subr.bf16.mxu0 0
    %878 = vmatpush1.bf16.msra.mxu0 0
    %879 = vmatprep.subr.bf16.mxu0 0
    %880 = vmatpush1.bf16.msra.mxu0 0
    %881 = vmatprep.subr.bf16.mxu0 0
    %882 = vmatpush1.bf16.msra.mxu0 0
    %883 = vmatprep.subr.bf16.mxu0 0
    %884 = vmatpush1.bf16.msra.mxu0 0
    %885 = vmatprep.subr.bf16.mxu0 0
    %886 = vmatpush1.bf16.msra.mxu0 0
    %887 = vmatprep.subr.bf16.mxu0 0
    %888 = vmatpush1.bf16.msra.mxu0 0
    %889 = vmatprep.subr.bf16.mxu0 0
    %890 = vmatpush1.bf16.msra.mxu0 0
    %891 = vmatprep.subr.bf16.mxu0 0
    %892 = vmatpush1.bf16.msra.mxu0 0
    %893 = vmatprep.subr.bf16.mxu0 0
    %894 = vmatpush1.bf16.msra.mxu0 0
    %895 = vmatprep.subr.bf16.mxu0 0
    %896 = vmatpush1.bf16.msra.mxu0 0
    %897 = vmatprep.mubr.bf16.mxu0 0
    %898 = vmatmul.mubr.bf16.gmra.mrb[0].mxu0 %v294
    %v899 = vpop.f32.mrb[0].mxu0
    %v900 = vadd.f32 0.0, %v899
    %v901 = vpop.f32.mrb[0].mxu0
    %v902 = vadd.f32 0.0, %v901
    %v903 = vpop.f32.mrb[0].mxu0
    %v904 = vadd.f32 0.0, %v903
    %v905 = vpop.f32.mrb[0].mxu0
    %v906 = vadd.f32 0.0, %v905
    %907 = vdwg.mxu0
    %v908 = vmul.f32 %v900, 2.0
    %v909 = vmul.f32 %v902, 2.0
    %v910 = vmul.f32 %v904, 2.0
    %v911 = vmul.f32 %v906, 2.0
    %v912 = vsub.f32 %v908, %v861
    %v913 = vsub.f32 %v909, %v862
    %v914 = vsub.f32 %v910, %v863
    %v915 = vsub.f32 %v911, %v864
    %v916 = vpack.c.bf16 %v914, %v912
    %v917 = vpack.c.bf16 %v915, %v913
    %v934 = vunpack.c.l.b16 %v171
    %v935 = vunpack.c.l.b16 %v172
    %v936 = vunpack.c.l.b16 %v173
    %v937 = vunpack.c.l.b16 %v174
    %v938 = vunpack.c.l.b16 %v175
    %v939 = vunpack.c.l.b16 %v176
    %v940 = vunpack.c.l.b16 %v177
    %v941 = vunpack.c.l.b16 %v178
    %v942 = vunpack.c.l.b16 %v179
    %v943 = vunpack.c.l.b16 %v180
    %v944 = vunpack.c.l.b16 %v181
    %v945 = vunpack.c.l.b16 %v182
    %v946 = vunpack.c.l.b16 %v183
    %v947 = vunpack.c.l.b16 %v184
    %v948 = vunpack.c.l.b16 %v185
    %v949 = vunpack.c.l.b16 %v186
    %v950 = vpack.c.b16 %v935, %v934
    %v951 = vpack.c.b16 %v937, %v936
    %v952 = vpack.c.b16 %v939, %v938
    %v953 = vpack.c.b16 %v941, %v940
    %v954 = vpack.c.b16 %v943, %v942
    %v955 = vpack.c.b16 %v945, %v944
    %v956 = vpack.c.b16 %v947, %v946
    %v957 = vpack.c.b16 %v949, %v948
    %966 = vmatprep.subr.bf16.mxu0 0
    %967 = vmatpush1.bf16.msra.mxu0 %v950
    %968 = vmatprep.subr.bf16.mxu0 0
    %969 = vmatpush1.bf16.msra.mxu0 %v951
    %970 = vmatprep.subr.bf16.mxu0 0
    %971 = vmatpush1.bf16.msra.mxu0 %v952
    %972 = vmatprep.subr.bf16.mxu0 0
    %973 = vmatpush1.bf16.msra.mxu0 %v953
    %974 = vmatprep.subr.bf16.mxu0 0
    %975 = vmatpush1.bf16.msra.mxu0 %v954
    %976 = vmatprep.subr.bf16.mxu0 0
    %977 = vmatpush1.bf16.msra.mxu0 %v955
    %978 = vmatprep.subr.bf16.mxu0 0
    %979 = vmatpush1.bf16.msra.mxu0 %v956
    %980 = vmatprep.subr.bf16.mxu0 0
    %981 = vmatpush1.bf16.msra.mxu0 %v957
    %982 = vmatprep.subr.bf16.mxu0 0
    %983 = vmatpush1.bf16.msra.mxu0 0
    %984 = vmatprep.subr.bf16.mxu0 0
    %985 = vmatpush1.bf16.msra.mxu0 0
    %986 = vmatprep.subr.bf16.mxu0 0
    %987 = vmatpush1.bf16.msra.mxu0 0
    %988 = vmatprep.subr.bf16.mxu0 0
    %989 = vmatpush1.bf16.msra.mxu0 0
    %990 = vmatprep.subr.bf16.mxu0 0
    %991 = vmatpush1.bf16.msra.mxu0 0
    %992 = vmatprep.subr.bf16.mxu0 0
    %993 = vmatpush1.bf16.msra.mxu0 0
    %994 = vmatprep.subr.bf16.mxu0 0
    %995 = vmatpush1.bf16.msra.mxu0 0
    %996 = vmatprep.subr.bf16.mxu0 0
    %997 = vmatpush1.bf16.msra.mxu0 0
    %998 = vmatprep.mubr.bf16.mxu0 0
    %999 = vmatmul.mubr.bf16.gmra.mrb[0].mxu0 %v916
    %v1000 = vpop.f32.mrb[0].mxu0
    %v1001 = vadd.f32 0.0, %v1000
    %v1002 = vpop.f32.mrb[0].mxu0
    %v1003 = vpop.f32.mrb[0].mxu0
    %v1004 = vadd.f32 0.0, %v1003
    %v1005 = vpop.f32.mrb[0].mxu0
    %1006 = vdwg.mxu0
    %v1007 = vadd.f32 %v513, %v1001
    %v1008 = vadd.f32 %v516, %v1004
    %1009 = vmatprep.subr.bf16.mxu0 0
    %1010 = vmatpush1.bf16.msra.mxu0 %v950
    %1011 = vmatprep.subr.bf16.mxu0 0
    %1012 = vmatpush1.bf16.msra.mxu0 %v951
    %1013 = vmatprep.subr.bf16.mxu0 0
    %1014 = vmatpush1.bf16.msra.mxu0 %v952
    %1015 = vmatprep.subr.bf16.mxu0 0
    %1016 = vmatpush1.bf16.msra.mxu0 %v953
    %1017 = vmatprep.subr.bf16.mxu0 0
    %1018 = vmatpush1.bf16.msra.mxu0 %v954
    %1019 = vmatprep.subr.bf16.mxu0 0
    %1020 = vmatpush1.bf16.msra.mxu0 %v955
    %1021 = vmatprep.subr.bf16.mxu0 0
    %1022 = vmatpush1.bf16.msra.mxu0 %v956
    %1023 = vmatprep.subr.bf16.mxu0 0
    %1024 = vmatpush1.bf16.msra.mxu0 %v957
    %1025 = vmatprep.subr.bf16.mxu0 0
    %1026 = vmatpush1.bf16.msra.mxu0 0
    %1027 = vmatprep.subr.bf16.mxu0 0
    %1028 = vmatpush1.bf16.msra.mxu0 0
    %1029 = vmatprep.subr.bf16.mxu0 0
    %1030 = vmatpush1.bf16.msra.mxu0 0
    %1031 = vmatprep.subr.bf16.mxu0 0
    %1032 = vmatpush1.bf16.msra.mxu0 0
    %1033 = vmatprep.subr.bf16.mxu0 0
    %1034 = vmatpush1.bf16.msra.mxu0 0
    %1035 = vmatprep.subr.bf16.mxu0 0
    %1036 = vmatpush1.bf16.msra.mxu0 0
    %1037 = vmatprep.subr.bf16.mxu0 0
    %1038 = vmatpush1.bf16.msra.mxu0 0
    %1039 = vmatprep.subr.bf16.mxu0 0
    %1040 = vmatpush1.bf16.msra.mxu0 0
    %1041 = vmatprep.mubr.bf16.mxu0 0
    %1042 = vmatmul.mubr.bf16.gmra.mrb[0].mxu0 %v917
    %v1043 = vpop.f32.mrb[0].mxu0
    %v1044 = vadd.f32 0.0, %v1043
    %v1045 = vpop.f32.mrb[0].mxu0
    %v1046 = vpop.f32.mrb[0].mxu0
    %v1047 = vadd.f32 0.0, %v1046
    %v1048 = vpop.f32.mrb[0].mxu0
    %1049 = vdwg.mxu0
    %v1050 = vadd.f32 %v595, %v1044
    %v1051 = vadd.f32 %v598, %v1047
    %v1068 = vunpack.c.l.b16 %v221
    %v1069 = vunpack.c.l.b16 %v222
    %v1070 = vunpack.c.l.b16 %v223
    %v1071 = vunpack.c.l.b16 %v224
    %v1072 = vunpack.c.l.b16 %v225
    %v1073 = vunpack.c.l.b16 %v226
    %v1074 = vunpack.c.l.b16 %v227
    %v1075 = vunpack.c.l.b16 %v228
    %v1076 = vunpack.c.l.b16 %v229
    %v1077 = vunpack.c.l.b16 %v230
    %v1078 = vunpack.c.l.b16 %v231
    %v1079 = vunpack.c.l.b16 %v232
    %v1080 = vunpack.c.l.b16 %v233
    %v1081 = vunpack.c.l.b16 %v234
    %v1082 = vunpack.c.l.b16 %v235
    %v1083 = vunpack.c.l.b16 %v236
    %v1084 = vpack.c.b16 %v1069, %v1068
    %v1085 = vpack.c.b16 %v1071, %v1070
    %v1086 = vpack.c.b16 %v1073, %v1072
    %v1087 = vpack.c.b16 %v1075, %v1074
    %v1088 = vpack.c.b16 %v1077, %v1076
    %v1089 = vpack.c.b16 %v1079, %v1078
    %v1090 = vpack.c.b16 %v1081, %v1080
    %v1091 = vpack.c.b16 %v1083, %v1082
    %1100 = vmatprep.subr.bf16.mxu0 0
    %1101 = vmatpush1.bf16.msra.mxu0 %v1084
    %1102 = vmatprep.subr.bf16.mxu0 0
    %1103 = vmatpush1.bf16.msra.mxu0 %v1085
    %1104 = vmatprep.subr.bf16.mxu0 0
    %1105 = vmatpush1.bf16.msra.mxu0 %v1086
    %1106 = vmatprep.subr.bf16.mxu0 0
    %1107 = vmatpush1.bf16.msra.mxu0 %v1087
    %1108 = vmatprep.subr.bf16.mxu0 0
    %1109 = vmatpush1.bf16.msra.mxu0 %v1088
    %1110 = vmatprep.subr.bf16.mxu0 0
    %1111 = vmatpush1.bf16.msra.mxu0 %v1089
    %1112 = vmatprep.subr.bf16.mxu0 0
    %1113 = vmatpush1.bf16.msra.mxu0 %v1090
    %1114 = vmatprep.subr.bf16.mxu0 0
    %1115 = vmatpush1.bf16.msra.mxu0 %v1091
    %1116 = vmatprep.subr.bf16.mxu0 0
    %1117 = vmatpush1.bf16.msra.mxu0 0
    %1118 = vmatprep.subr.bf16.mxu0 0
    %1119 = vmatpush1.bf16.msra.mxu0 0
    %1120 = vmatprep.subr.bf16.mxu0 0
    %1121 = vmatpush1.bf16.msra.mxu0 0
    %1122 = vmatprep.subr.bf16.mxu0 0
    %1123 = vmatpush1.bf16.msra.mxu0 0
    %1124 = vmatprep.subr.bf16.mxu0 0
    %1125 = vmatpush1.bf16.msra.mxu0 0
    %1126 = vmatprep.subr.bf16.mxu0 0
    %1127 = vmatpush1.bf16.msra.mxu0 0
    %1128 = vmatprep.subr.bf16.mxu0 0
    %1129 = vmatpush1.bf16.msra.mxu0 0
    %1130 = vmatprep.subr.bf16.mxu0 0
    %1131 = vmatpush1.bf16.msra.mxu0 0
    %1132 = vmatprep.mubr.bf16.mxu0 0
    %1133 = vmatmul.mubr.bf16.gmra.mrb[0].mxu0 %v916
    %v1134 = vpop.f32.mrb[0].mxu0
    %v1135 = vadd.f32 0.0, %v1134
    %v1136 = vpop.f32.mrb[0].mxu0
    %v1137 = vpop.f32.mrb[0].mxu0
    %v1138 = vadd.f32 0.0, %v1137
    %v1139 = vpop.f32.mrb[0].mxu0
    %1140 = vdwg.mxu0
    %v1141 = vadd.f32 %v773, %v1135
    %v1142 = vadd.f32 %v776, %v1138
    %1143 = vmatprep.subr.bf16.mxu0 0
    %1144 = vmatpush1.bf16.msra.mxu0 %v1084
    %1145 = vmatprep.subr.bf16.mxu0 0
    %1146 = vmatpush1.bf16.msra.mxu0 %v1085
    %1147 = vmatprep.subr.bf16.mxu0 0
    %1148 = vmatpush1.bf16.msra.mxu0 %v1086
    %1149 = vmatprep.subr.bf16.mxu0 0
    %1150 = vmatpush1.bf16.msra.mxu0 %v1087
    %1151 = vmatprep.subr.bf16.mxu0 0
    %1152 = vmatpush1.bf16.msra.mxu0 %v1088
    %1153 = vmatprep.subr.bf16.mxu0 0
    %1154 = vmatpush1.bf16.msra.mxu0 %v1089
    %1155 = vmatprep.subr.bf16.mxu0 0
    %1156 = vmatpush1.bf16.msra.mxu0 %v1090
    %1157 = vmatprep.subr.bf16.mxu0 0
    %1158 = vmatpush1.bf16.msra.mxu0 %v1091
    %1159 = vmatprep.subr.bf16.mxu0 0
    %1160 = vmatpush1.bf16.msra.mxu0 0
    %1161 = vmatprep.subr.bf16.mxu0 0
    %1162 = vmatpush1.bf16.msra.mxu0 0
    %1163 = vmatprep.subr.bf16.mxu0 0
    %1164 = vmatpush1.bf16.msra.mxu0 0
    %1165 = vmatprep.subr.bf16.mxu0 0
    %1166 = vmatpush1.bf16.msra.mxu0 0
    %1167 = vmatprep.subr.bf16.mxu0 0
    %1168 = vmatpush1.bf16.msra.mxu0 0
    %1169 = vmatprep.subr.bf16.mxu0 0
    %1170 = vmatpush1.bf16.msra.mxu0 0
    %1171 = vmatprep.subr.bf16.mxu0 0
    %1172 = vmatpush1.bf16.msra.mxu0 0
    %1173 = vmatprep.subr.bf16.mxu0 0
    %1174 = vmatpush1.bf16.msra.mxu0 0
    %1175 = vmatprep.mubr.bf16.mxu0 0
    %1176 = vmatmul.mubr.bf16.gmra.mrb[0].mxu0 %v917
    %v1177 = vpop.f32.mrb[0].mxu0
    %v1178 = vadd.f32 0.0, %v1177
    %v1179 = vpop.f32.mrb[0].mxu0
    %v1180 = vpop.f32.mrb[0].mxu0
    %v1181 = vadd.f32 0.0, %v1180
    %v1182 = vpop.f32.mrb[0].mxu0
    %1183 = vdwg.mxu0
    %v1184 = vadd.f32 %v855, %v1178
    %v1185 = vadd.f32 %v858, %v1181
    %v1186 = vld [vmem:[%s6] sm:$0x3]
    %v1188 = vlaneseq
    %v1189 = vshrl.u32 %v1188, 7
    %v1190 = vsub.s32 0, %v1189
    %v1191 = vrot.slane %v1186, %v1190
    %v1192 = vlaneseq
    %v1193 = vshrl.u32 %v1192, 7
    %v1194 = vsub.s32 1, %v1193
    %v1195 = vrot.slane %v1186, %v1194
    %v1198 = vadd.f32 %v1007, %v1191
    %v1199 = vadd.f32 %v1050, %v1195
    %v1200 = vadd.f32 %v1008, %v1191
    %v1201 = vadd.f32 %v1051, %v1195
    %v1202 = vxor.u32 %v1198, 2147483648
    %v1203 = vxor.u32 %v1199, 2147483648
    %v1204 = vxor.u32 %v1200, 2147483648
    %v1205 = vxor.u32 %v1201, 2147483648
    %v1206 = vmul.f32 %v1202, 1.442695
    %v1207 = vpow.pop %v1206
    %v1208 = vmul.f32 %v1203, 1.442695
    %v1209 = vpow.pop %v1208
    %v1210 = vmul.f32 %v1204, 1.442695
    %v1211 = vpow.pop %v1210
    %v1212 = vmul.f32 %v1205, 1.442695
    %v1213 = vpow.pop %v1212
    %v1214 = vadd.f32 %v1207, 1.0
    %v1215 = vadd.f32 %v1209, 1.0
    %v1216 = vadd.f32 %v1211, 1.0
    %v1217 = vadd.f32 %v1213, 1.0
    %v1218 = vrcp.pop %v1214
    %v1219 = vmul.f32 1.0, %v1218
    %v1220 = vrcp.pop %v1215
    %v1221 = vmul.f32 1.0, %v1220
    %v1222 = vrcp.pop %v1216
    %v1223 = vmul.f32 1.0, %v1222
    %v1224 = vrcp.pop %v1217
    %v1225 = vmul.f32 1.0, %v1224
    %v1226 = vld [vmem:[#allocation10] sm:$0x3]
    %v1228 = vlaneseq
    %v1229 = vshrl.u32 %v1228, 7
    %v1230 = vsub.s32 0, %v1229
    %v1231 = vrot.slane %v1226, %v1230
    %v1232 = vlaneseq
    %v1233 = vshrl.u32 %v1232, 7
    %v1234 = vsub.s32 1, %v1233
    %v1235 = vrot.slane %v1226, %v1234
    %v1238 = vadd.f32 %v1141, %v1231
    %v1239 = vadd.f32 %v1184, %v1235
    %v1240 = vadd.f32 %v1142, %v1231
    %v1241 = vadd.f32 %v1185, %v1235
    %v1242 = vxor.u32 %v1238, 2147483648
    %v1243 = vxor.u32 %v1239, 2147483648
    %v1244 = vxor.u32 %v1240, 2147483648
    %v1245 = vxor.u32 %v1241, 2147483648
    %v1246 = vmul.f32 %v1242, 1.442695
    %v1247 = vpow.pop %v1246
    %v1248 = vmul.f32 %v1243, 1.442695
    %v1249 = vpow.pop %v1248
    %v1250 = vmul.f32 %v1244, 1.442695
    %v1251 = vpow.pop %v1250
    %v1252 = vmul.f32 %v1245, 1.442695
    %v1253 = vpow.pop %v1252
    %v1254 = vadd.f32 %v1247, 1.0
    %v1255 = vadd.f32 %v1249, 1.0
    %v1256 = vadd.f32 %v1251, 1.0
    %v1257 = vadd.f32 %v1253, 1.0
    %v1258 = vrcp.pop %v1254
    %v1259 = vmul.f32 1.0, %v1258
    %v1260 = vrcp.pop %v1255
    %v1261 = vmul.f32 1.0, %v1260
    %v1262 = vrcp.pop %v1256
    %v1263 = vmul.f32 1.0, %v1262
    %v1264 = vrcp.pop %v1257
    %v1265 = vmul.f32 1.0, %v1264
    %v1266 = vmul.f32 %v1219, %v119
    %v1267 = vmul.f32 %v1221, %v120
    %v1268 = vmul.f32 %v1223, %v121
    %v1269 = vmul.f32 %v1225, %v122
    %v1270 = vpack.c.bf16 %v1268, %v1266
    %v1271 = vpack.c.bf16 %v1269, %v1267
    %v1272 = vadd.bf16 %v1270, %v131
    %v1273 = vadd.bf16 %v1271, %v132
    %1274 = vmatprep.subr.bf16.mxu0 %v1273
    %1275 = vmatpush1.bf16.msra.mxu0 %v1272
    %1276 = vmatprep.subr.bf16.mxu0 0
    %1277 = vmatpush1.bf16.msra.mxu0 0
    %1278 = vmatprep.subr.bf16.mxu0 0
    %1279 = vmatpush1.bf16.msra.mxu0 0
    %1280 = vmatprep.subr.bf16.mxu0 0
    %1281 = vmatpush1.bf16.msra.mxu0 0
    %1282 = vmatprep.subr.bf16.mxu0 0
    %1283 = vmatpush1.bf16.msra.mxu0 0
    %1284 = vmatprep.subr.bf16.mxu0 0
    %1285 = vmatpush1.bf16.msra.mxu0 0
    %1286 = vmatprep.subr.bf16.mxu0 0
    %1287 = vmatpush1.bf16.msra.mxu0 0
    %1288 = vmatprep.subr.bf16.mxu0 0
    %1289 = vmatpush1.bf16.msra.mxu0 0
    %1290 = vmatprep.subr.bf16.mxu0 0
    %1291 = vmatpush1.bf16.msra.mxu0 0
    %1292 = vmatprep.subr.bf16.mxu0 0
    %1293 = vmatpush1.bf16.msra.mxu0 0
    %1294 = vmatprep.subr.bf16.mxu0 0
    %1295 = vmatpush1.bf16.msra.mxu0 0
    %1296 = vmatprep.subr.bf16.mxu0 0
    %1297 = vmatpush1.bf16.msra.mxu0 0
    %1298 = vmatprep.subr.bf16.mxu0 0
    %1299 = vmatpush1.bf16.msra.mxu0 0
    %1300 = vmatprep.subr.bf16.mxu0 0
    %1301 = vmatpush1.bf16.msra.mxu0 0
    %1302 = vmatprep.subr.bf16.mxu0 0
    %1303 = vmatpush1.bf16.msra.mxu0 0
    %1304 = vmatprep.subr.bf16.mxu0 0
    %1305 = vmatpush1.bf16.msra.mxu0 0
    %1306 = vmatprep.mubr.bf16.mxu0 0
    %1307 = vmatmul.mubr.bf16.gmra.mrb[0].mxu0 %v294
    %v1308 = vpop.f32.mrb[0].mxu0
    %v1309 = vadd.f32 0.0, %v1308
    %v1310 = vpop.f32.mrb[0].mxu0
    %v1311 = vadd.f32 0.0, %v1310
    %v1312 = vpop.f32.mrb[0].mxu0
    %v1313 = vadd.f32 0.0, %v1312
    %v1314 = vpop.f32.mrb[0].mxu0
    %v1315 = vadd.f32 0.0, %v1314
    %1316 = vdwg.mxu0
    %v1317 = vpack.c.bf16 %v1313, %v1309
    %v1318 = vpack.c.bf16 %v1315, %v1311
    %v1335 = vunpack.c.l.b16 %v254
    %v1336 = vunpack.c.l.b16 %v255
    %v1337 = vunpack.c.l.b16 %v256
    %v1338 = vunpack.c.l.b16 %v257
    %v1339 = vunpack.c.l.b16 %v258
    %v1340 = vunpack.c.l.b16 %v259
    %v1341 = vunpack.c.l.b16 %v260
    %v1342 = vunpack.c.l.b16 %v261
    %v1343 = vunpack.c.l.b16 %v262
    %v1344 = vunpack.c.l.b16 %v263
    %v1345 = vunpack.c.l.b16 %v264
    %v1346 = vunpack.c.l.b16 %v265
    %v1347 = vunpack.c.l.b16 %v266
    %v1348 = vunpack.c.l.b16 %v267
    %v1349 = vunpack.c.l.b16 %v268
    %v1350 = vunpack.c.l.b16 %v269
    %v1351 = vpack.c.b16 %v1336, %v1335
    %v1352 = vpack.c.b16 %v1338, %v1337
    %v1353 = vpack.c.b16 %v1340, %v1339
    %v1354 = vpack.c.b16 %v1342, %v1341
    %v1355 = vpack.c.b16 %v1344, %v1343
    %v1356 = vpack.c.b16 %v1346, %v1345
    %v1357 = vpack.c.b16 %v1348, %v1347
    %v1358 = vpack.c.b16 %v1350, %v1349
    %1367 = vmatprep.subr.bf16.mxu0 0
    %1368 = vmatpush1.bf16.msra.mxu0 %v1351
    %1369 = vmatprep.subr.bf16.mxu0 0
    %1370 = vmatpush1.bf16.msra.mxu0 %v1352
    %1371 = vmatprep.subr.bf16.mxu0 0
    %1372 = vmatpush1.bf16.msra.mxu0 %v1353
    %1373 = vmatprep.subr.bf16.mxu0 0
    %1374 = vmatpush1.bf16.msra.mxu0 %v1354
    %1375 = vmatprep.subr.bf16.mxu0 0
    %1376 = vmatpush1.bf16.msra.mxu0 %v1355
    %1377 = vmatprep.subr.bf16.mxu0 0
    %1378 = vmatpush1.bf16.msra.mxu0 %v1356
    %1379 = vmatprep.subr.bf16.mxu0 0
    %1380 = vmatpush1.bf16.msra.mxu0 %v1357
    %1381 = vmatprep.subr.bf16.mxu0 0
    %1382 = vmatpush1.bf16.msra.mxu0 %v1358
    %1383 = vmatprep.subr.bf16.mxu0 0
    %1384 = vmatpush1.bf16.msra.mxu0 0
    %1385 = vmatprep.subr.bf16.mxu0 0
    %1386 = vmatpush1.bf16.msra.mxu0 0
    %1387 = vmatprep.subr.bf16.mxu0 0
    %1388 = vmatpush1.bf16.msra.mxu0 0
    %1389 = vmatprep.subr.bf16.mxu0 0
    %1390 = vmatpush1.bf16.msra.mxu0 0
    %1391 = vmatprep.subr.bf16.mxu0 0
    %1392 = vmatpush1.bf16.msra.mxu0 0
    %1393 = vmatprep.subr.bf16.mxu0 0
    %1394 = vmatpush1.bf16.msra.mxu0 0
    %1395 = vmatprep.subr.bf16.mxu0 0
    %1396 = vmatpush1.bf16.msra.mxu0 0
    %1397 = vmatprep.subr.bf16.mxu0 0
    %1398 = vmatpush1.bf16.msra.mxu0 0
    %1399 = vmatprep.mubr.bf16.mxu0 0
    %1400 = vmatmul.mubr.bf16.gmra.mrb[0].mxu0 %v1317
    %v1401 = vpop.f32.mrb[0].mxu0
    %v1402 = vadd.f32 0.0, %v1401
    %v1403 = vpop.f32.mrb[0].mxu0
    %v1404 = vpop.f32.mrb[0].mxu0
    %v1405 = vadd.f32 0.0, %v1404
    %v1406 = vpop.f32.mrb[0].mxu0
    %1407 = vdwg.mxu0
    %v1424 = vunpack.c.l.b16 %v237
    %v1425 = vunpack.c.l.b16 %v238
    %v1426 = vunpack.c.l.b16 %v239
    %v1427 = vunpack.c.l.b16 %v240
    %v1428 = vunpack.c.l.b16 %v241
    %v1429 = vunpack.c.l.b16 %v242
    %v1430 = vunpack.c.l.b16 %v243
    %v1431 = vunpack.c.l.b16 %v244
    %v1432 = vunpack.c.l.b16 %v245
    %v1433 = vunpack.c.l.b16 %v246
    %v1434 = vunpack.c.l.b16 %v247
    %v1435 = vunpack.c.l.b16 %v248
    %v1436 = vunpack.c.l.b16 %v249
    %v1437 = vunpack.c.l.b16 %v250
    %v1438 = vunpack.c.l.b16 %v251
    %v1439 = vunpack.c.l.b16 %v252
    %v1440 = vpack.c.b16 %v1425, %v1424
    %v1441 = vpack.c.b16 %v1427, %v1426
    %v1442 = vpack.c.b16 %v1429, %v1428
    %v1443 = vpack.c.b16 %v1431, %v1430
    %v1444 = vpack.c.b16 %v1433, %v1432
    %v1445 = vpack.c.b16 %v1435, %v1434
    %v1446 = vpack.c.b16 %v1437, %v1436
    %v1447 = vpack.c.b16 %v1439, %v1438
    %1456 = vmatprep.subr.bf16.mxu0 0
    %1457 = vmatpush1.bf16.msra.mxu0 %v1440
    %1458 = vmatprep.subr.bf16.mxu0 0
    %1459 = vmatpush1.bf16.msra.mxu0 %v1441
    %1460 = vmatprep.subr.bf16.mxu0 0
    %1461 = vmatpush1.bf16.msra.mxu0 %v1442
    %1462 = vmatprep.subr.bf16.mxu0 0
    %1463 = vmatpush1.bf16.msra.mxu0 %v1443
    %1464 = vmatprep.subr.bf16.mxu0 0
    %1465 = vmatpush1.bf16.msra.mxu0 %v1444
    %1466 = vmatprep.subr.bf16.mxu0 0
    %1467 = vmatpush1.bf16.msra.mxu0 %v1445
    %1468 = vmatprep.subr.bf16.mxu0 0
    %1469 = vmatpush1.bf16.msra.mxu0 %v1446
    %1470 = vmatprep.subr.bf16.mxu0 0
    %1471 = vmatpush1.bf16.msra.mxu0 %v1447
    %1472 = vmatprep.subr.bf16.mxu0 0
    %1473 = vmatpush1.bf16.msra.mxu0 0
    %1474 = vmatprep.subr.bf16.mxu0 0
    %1475 = vmatpush1.bf16.msra.mxu0 0
    %1476 = vmatprep.subr.bf16.mxu0 0
    %1477 = vmatpush1.bf16.msra.mxu0 0
    %1478 = vmatprep.subr.bf16.mxu0 0
    %1479 = vmatpush1.bf16.msra.mxu0 0
    %1480 = vmatprep.subr.bf16.mxu0 0
    %1481 = vmatpush1.bf16.msra.mxu0 0
    %1482 = vmatprep.subr.bf16.mxu0 0
    %1483 = vmatpush1.bf16.msra.mxu0 0
    %1484 = vmatprep.subr.bf16.mxu0 0
    %1485 = vmatpush1.bf16.msra.mxu0 0
    %1486 = vmatprep.subr.bf16.mxu0 0
    %1487 = vmatpush1.bf16.msra.mxu0 0
    %1488 = vmatprep.mubr.bf16.mxu0 0
    %1489 = vmatmul.mubr.bf16.gmra.mrb[0].mxu0 %v1272
    %v1490 = vpop.f32.mrb[0].mxu0
    %v1491 = vadd.f32 %v1402, %v1490
    %v1492 = vpop.f32.mrb[0].mxu0
    %v1493 = vpop.f32.mrb[0].mxu0
    %v1494 = vadd.f32 %v1405, %v1493
    %v1495 = vpop.f32.mrb[0].mxu0
    %1496 = vdwg.mxu0
    %1497 = vmatprep.subr.bf16.mxu0 0
    %1498 = vmatpush1.bf16.msra.mxu0 %v1351
    %1499 = vmatprep.subr.bf16.mxu0 0
    %1500 = vmatpush1.bf16.msra.mxu0 %v1352
    %1501 = vmatprep.subr.bf16.mxu0 0
    %1502 = vmatpush1.bf16.msra.mxu0 %v1353
    %1503 = vmatprep.subr.bf16.mxu0 0
    %1504 = vmatpush1.bf16.msra.mxu0 %v1354
    %1505 = vmatprep.subr.bf16.mxu0 0
    %1506 = vmatpush1.bf16.msra.mxu0 %v1355
    %1507 = vmatprep.subr.bf16.mxu0 0
    %1508 = vmatpush1.bf16.msra.mxu0 %v1356
    %1509 = vmatprep.subr.bf16.mxu0 0
    %1510 = vmatpush1.bf16.msra.mxu0 %v1357
    %1511 = vmatprep.subr.bf16.mxu0 0
    %1512 = vmatpush1.bf16.msra.mxu0 %v1358
    %1513 = vmatprep.subr.bf16.mxu0 0
    %1514 = vmatpush1.bf16.msra.mxu0 0
    %1515 = vmatprep.subr.bf16.mxu0 0
    %1516 = vmatpush1.bf16.msra.mxu0 0
    %1517 = vmatprep.subr.bf16.mxu0 0
    %1518 = vmatpush1.bf16.msra.mxu0 0
    %1519 = vmatprep.subr.bf16.mxu0 0
    %1520 = vmatpush1.bf16.msra.mxu0 0
    %1521 = vmatprep.subr.bf16.mxu0 0
    %1522 = vmatpush1.bf16.msra.mxu0 0
    %1523 = vmatprep.subr.bf16.mxu0 0
    %1524 = vmatpush1.bf16.msra.mxu0 0
    %1525 = vmatprep.subr.bf16.mxu0 0
    %1526 = vmatpush1.bf16.msra.mxu0 0
    %1527 = vmatprep.subr.bf16.mxu0 0
    %1528 = vmatpush1.bf16.msra.mxu0 0
    %1529 = vmatprep.mubr.bf16.mxu0 0
    %1530 = vmatmul.mubr.bf16.gmra.mrb[0].mxu0 %v1318
    %v1531 = vpop.f32.mrb[0].mxu0
    %v1532 = vadd.f32 0.0, %v1531
    %v1533 = vpop.f32.mrb[0].mxu0
    %v1534 = vpop.f32.mrb[0].mxu0
    %v1535 = vadd.f32 0.0, %v1534
    %v1536 = vpop.f32.mrb[0].mxu0
    %1537 = vdwg.mxu0
    %1538 = vmatprep.subr.bf16.mxu0 0
    %1539 = vmatpush1.bf16.msra.mxu0 %v1440
    %1540 = vmatprep.subr.bf16.mxu0 0
    %1541 = vmatpush1.bf16.msra.mxu0 %v1441
    %1542 = vmatprep.subr.bf16.mxu0 0
    %1543 = vmatpush1.bf16.msra.mxu0 %v1442
    %1544 = vmatprep.subr.bf16.mxu0 0
    %1545 = vmatpush1.bf16.msra.mxu0 %v1443
    %1546 = vmatprep.subr.bf16.mxu0 0
    %1547 = vmatpush1.bf16.msra.mxu0 %v1444
    %1548 = vmatprep.subr.bf16.mxu0 0
    %1549 = vmatpush1.bf16.msra.mxu0 %v1445
    %1550 = vmatprep.subr.bf16.mxu0 0
    %1551 = vmatpush1.bf16.msra.mxu0 %v1446
    %1552 = vmatprep.subr.bf16.mxu0 0
    %1553 = vmatpush1.bf16.msra.mxu0 %v1447
    %1554 = vmatprep.subr.bf16.mxu0 0
    %1555 = vmatpush1.bf16.msra.mxu0 0
    %1556 = vmatprep.subr.bf16.mxu0 0
    %1557 = vmatpush1.bf16.msra.mxu0 0
    %1558 = vmatprep.subr.bf16.mxu0 0
    %1559 = vmatpush1.bf16.msra.mxu0 0
    %1560 = vmatprep.subr.bf16.mxu0 0
    %1561 = vmatpush1.bf16.msra.mxu0 0
    %1562 = vmatprep.subr.bf16.mxu0 0
    %1563 = vmatpush1.bf16.msra.mxu0 0
    %1564 = vmatprep.subr.bf16.mxu0 0
    %1565 = vmatpush1.bf16.msra.mxu0 0
    %1566 = vmatprep.subr.bf16.mxu0 0
    %1567 = vmatpush1.bf16.msra.mxu0 0
    %1568 = vmatprep.subr.bf16.mxu0 0
    %1569 = vmatpush1.bf16.msra.mxu0 0
    %1570 = vmatprep.mubr.bf16.mxu0 0
    %1571 = vmatmul.mubr.bf16.gmra.mrb[0].mxu0 %v1273
    %v1572 = vpop.f32.mrb[0].mxu0
    %v1573 = vadd.f32 %v1532, %v1572
    %v1574 = vpop.f32.mrb[0].mxu0
    %v1575 = vpop.f32.mrb[0].mxu0
    %v1576 = vadd.f32 %v1535, %v1575
    %v1577 = vpop.f32.mrb[0].mxu0
    %1578 = vdwg.mxu0
    %v1579 = vunpack.c.l.bf16 %v1272
    %v1580 = vunpack.c.l.bf16 %v1273
    %v1581 = vunpack.c.h.bf16 %v1272
    %v1582 = vunpack.c.h.bf16 %v1273
    %1583 = vmatprep.subr.bf16.mxu0 %v1318
    %1584 = vmatpush1.bf16.msra.mxu0 %v1317
    %1585 = vmatprep.subr.bf16.mxu0 0
    %1586 = vmatpush1.bf16.msra.mxu0 0
    %1587 = vmatprep.subr.bf16.mxu0 0
    %1588 = vmatpush1.bf16.msra.mxu0 0
    %1589 = vmatprep.subr.bf16.mxu0 0
    %1590 = vmatpush1.bf16.msra.mxu0 0
    %1591 = vmatprep.subr.bf16.mxu0 0
    %1592 = vmatpush1.bf16.msra.mxu0 0
    %1593 = vmatprep.subr.bf16.mxu0 0
    %1594 = vmatpush1.bf16.msra.mxu0 0
    %1595 = vmatprep.subr.bf16.mxu0 0
    %1596 = vmatpush1.bf16.msra.mxu0 0
    %1597 = vmatprep.subr.bf16.mxu0 0
    %1598 = vmatpush1.bf16.msra.mxu0 0
    %1599 = vmatprep.subr.bf16.mxu0 0
    %1600 = vmatpush1.bf16.msra.mxu0 0
    %1601 = vmatprep.subr.bf16.mxu0 0
    %1602 = vmatpush1.bf16.msra.mxu0 0
    %1603 = vmatprep.subr.bf16.mxu0 0
    %1604 = vmatpush1.bf16.msra.mxu0 0
    %1605 = vmatprep.subr.bf16.mxu0 0
    %1606 = vmatpush1.bf16.msra.mxu0 0
    %1607 = vmatprep.subr.bf16.mxu0 0
    %1608 = vmatpush1.bf16.msra.mxu0 0
    %1609 = vmatprep.subr.bf16.mxu0 0
    %1610 = vmatpush1.bf16.msra.mxu0 0
    %1611 = vmatprep.subr.bf16.mxu0 0
    %1612 = vmatpush1.bf16.msra.mxu0 0
    %1613 = vmatprep.subr.bf16.mxu0 0
    %1614 = vmatpush1.bf16.msra.mxu0 0
    %1615 = vmatprep.mubr.bf16.mxu0 0
    %1616 = vmatmul.mubr.bf16.gmra.mrb[0].mxu0 %v294
    %v1617 = vpop.f32.mrb[0].mxu0
    %v1618 = vadd.f32 0.0, %v1617
    %v1619 = vpop.f32.mrb[0].mxu0
    %v1620 = vadd.f32 0.0, %v1619
    %v1621 = vpop.f32.mrb[0].mxu0
    %v1622 = vadd.f32 0.0, %v1621
    %v1623 = vpop.f32.mrb[0].mxu0
    %v1624 = vadd.f32 0.0, %v1623
    %1625 = vdwg.mxu0
    %v1626 = vmul.f32 %v1618, 2.0
    %v1627 = vmul.f32 %v1620, 2.0
    %v1628 = vmul.f32 %v1622, 2.0
    %v1629 = vmul.f32 %v1624, 2.0
    %v1630 = vsub.f32 %v1626, %v1579
    %v1631 = vsub.f32 %v1627, %v1580
    %v1632 = vsub.f32 %v1628, %v1581
    %v1633 = vsub.f32 %v1629, %v1582
    %v1634 = vpack.c.bf16 %v1632, %v1630
    %v1635 = vpack.c.bf16 %v1633, %v1631
    %v1652 = vunpack.c.l.b16 %v271
    %v1653 = vunpack.c.l.b16 %v272
    %v1654 = vunpack.c.l.b16 %v273
    %v1655 = vunpack.c.l.b16 %v274
    %v1656 = vunpack.c.l.b16 %v275
    %v1657 = vunpack.c.l.b16 %v276
    %v1658 = vunpack.c.l.b16 %v277
    %v1659 = vunpack.c.l.b16 %v278
    %v1660 = vunpack.c.l.b16 %v279
    %v1661 = vunpack.c.l.b16 %v280
    %v1662 = vunpack.c.l.b16 %v281
    %v1663 = vunpack.c.l.b16 %v282
    %v1664 = vunpack.c.l.b16 %v283
    %v1665 = vunpack.c.l.b16 %v284
    %v1666 = vunpack.c.l.b16 %v285
    %v1667 = vunpack.c.l.b16 %v286
    %v1668 = vpack.c.b16 %v1653, %v1652
    %v1669 = vpack.c.b16 %v1655, %v1654
    %v1670 = vpack.c.b16 %v1657, %v1656
    %v1671 = vpack.c.b16 %v1659, %v1658
    %v1672 = vpack.c.b16 %v1661, %v1660
    %v1673 = vpack.c.b16 %v1663, %v1662
    %v1674 = vpack.c.b16 %v1665, %v1664
    %v1675 = vpack.c.b16 %v1667, %v1666
    %1684 = vmatprep.subr.bf16.mxu0 0
    %1685 = vmatpush1.bf16.msra.mxu0 %v1668
    %1686 = vmatprep.subr.bf16.mxu0 0
    %1687 = vmatpush1.bf16.msra.mxu0 %v1669
    %1688 = vmatprep.subr.bf16.mxu0 0
    %1689 = vmatpush1.bf16.msra.mxu0 %v1670
    %1690 = vmatprep.subr.bf16.mxu0 0
    %1691 = vmatpush1.bf16.msra.mxu0 %v1671
    %1692 = vmatprep.subr.bf16.mxu0 0
    %1693 = vmatpush1.bf16.msra.mxu0 %v1672
    %1694 = vmatprep.subr.bf16.mxu0 0
    %1695 = vmatpush1.bf16.msra.mxu0 %v1673
    %1696 = vmatprep.subr.bf16.mxu0 0
    %1697 = vmatpush1.bf16.msra.mxu0 %v1674
    %1698 = vmatprep.subr.bf16.mxu0 0
    %1699 = vmatpush1.bf16.msra.mxu0 %v1675
    %1700 = vmatprep.subr.bf16.mxu0 0
    %1701 = vmatpush1.bf16.msra.mxu0 0
    %1702 = vmatprep.subr.bf16.mxu0 0
    %1703 = vmatpush1.bf16.msra.mxu0 0
    %1704 = vmatprep.subr.bf16.mxu0 0
    %1705 = vmatpush1.bf16.msra.mxu0 0
    %1706 = vmatprep.subr.bf16.mxu0 0
    %1707 = vmatpush1.bf16.msra.mxu0 0
    %1708 = vmatprep.subr.bf16.mxu0 0
    %1709 = vmatpush1.bf16.msra.mxu0 0
    %1710 = vmatprep.subr.bf16.mxu0 0
    %1711 = vmatpush1.bf16.msra.mxu0 0
    %1712 = vmatprep.subr.bf16.mxu0 0
    %1713 = vmatpush1.bf16.msra.mxu0 0
    %1714 = vmatprep.subr.bf16.mxu0 0
    %1715 = vmatpush1.bf16.msra.mxu0 0
    %1716 = vmatprep.mubr.bf16.mxu0 0
    %1717 = vmatmul.mubr.bf16.gmra.mrb[0].mxu0 %v1634
    %v1718 = vpop.f32.mrb[0].mxu0
    %v1719 = vadd.f32 0.0, %v1718
    %v1720 = vpop.f32.mrb[0].mxu0
    %v1721 = vpop.f32.mrb[0].mxu0
    %v1722 = vadd.f32 0.0, %v1721
    %v1723 = vpop.f32.mrb[0].mxu0
    %1724 = vdwg.mxu0
    %v1725 = vadd.f32 %v1491, %v1719
    %v1726 = vadd.f32 %v1494, %v1722
    %1727 = vmatprep.subr.bf16.mxu0 0
    %1728 = vmatpush1.bf16.msra.mxu0 %v1668
    %1729 = vmatprep.subr.bf16.mxu0 0
    %1730 = vmatpush1.bf16.msra.mxu0 %v1669
    %1731 = vmatprep.subr.bf16.mxu0 0
    %1732 = vmatpush1.bf16.msra.mxu0 %v1670
    %1733 = vmatprep.subr.bf16.mxu0 0
    %1734 = vmatpush1.bf16.msra.mxu0 %v1671
    %1735 = vmatprep.subr.bf16.mxu0 0
    %1736 = vmatpush1.bf16.msra.mxu0 %v1672
    %1737 = vmatprep.subr.bf16.mxu0 0
    %1738 = vmatpush1.bf16.msra.mxu0 %v1673
    %1739 = vmatprep.subr.bf16.mxu0 0
    %1740 = vmatpush1.bf16.msra.mxu0 %v1674
    %1741 = vmatprep.subr.bf16.mxu0 0
    %1742 = vmatpush1.bf16.msra.mxu0 %v1675
    %1743 = vmatprep.subr.bf16.mxu0 0
    %1744 = vmatpush1.bf16.msra.mxu0 0
    %1745 = vmatprep.subr.bf16.mxu0 0
    %1746 = vmatpush1.bf16.msra.mxu0 0
    %1747 = vmatprep.subr.bf16.mxu0 0
    %1748 = vmatpush1.bf16.msra.mxu0 0
    %1749 = vmatprep.subr.bf16.mxu0 0
    %1750 = vmatpush1.bf16.msra.mxu0 0
    %1751 = vmatprep.subr.bf16.mxu0 0
    %1752 = vmatpush1.bf16.msra.mxu0 0
    %1753 = vmatprep.subr.bf16.mxu0 0
    %1754 = vmatpush1.bf16.msra.mxu0 0
    %1755 = vmatprep.subr.bf16.mxu0 0
    %1756 = vmatpush1.bf16.msra.mxu0 0
    %1757 = vmatprep.subr.bf16.mxu0 0
    %1758 = vmatpush1.bf16.msra.mxu0 0
    %1759 = vmatprep.mubr.bf16.mxu0 0
    %1760 = vmatmul.mubr.bf16.gmra.mrb[0].mxu0 %v1635
    %v1761 = vpop.f32.mrb[0].mxu0
    %v1762 = vadd.f32 0.0, %v1761
    %v1763 = vpop.f32.mrb[0].mxu0
    %v1764 = vpop.f32.mrb[0].mxu0
    %v1765 = vadd.f32 0.0, %v1764
    %v1766 = vpop.f32.mrb[0].mxu0
    %1767 = vdwg.mxu0
    %v1768 = vadd.f32 %v1573, %v1762
    %v1769 = vadd.f32 %v1576, %v1765
    %v1770 = vld [vmem:[#allocation11] sm:$0x3]
    %v1772 = vlaneseq
    %v1773 = vshrl.u32 %v1772, 7
    %v1774 = vsub.s32 0, %v1773
    %v1775 = vrot.slane %v1770, %v1774
    %v1776 = vlaneseq
    %v1777 = vshrl.u32 %v1776, 7
    %v1778 = vsub.s32 1, %v1777
    %v1779 = vrot.slane %v1770, %v1778
    %v1782 = vadd.f32 %v1725, %v1775
    %v1783 = vadd.f32 %v1768, %v1779
    %v1784 = vadd.f32 %v1726, %v1775
    %v1785 = vadd.f32 %v1769, %v1779
    %v1786 = vtanh.pop %v1782
    %v1787 = vtanh.pop %v1783
    %v1788 = vtanh.pop %v1784
    %v1789 = vtanh.pop %v1785
    %v1790 = vmul.f32 %v1259, %v119
    %v1791 = vmul.f32 %v1261, %v120
    %v1792 = vmul.f32 %v1263, %v121
    %v1793 = vmul.f32 %v1265, %v122
    %v1794 = vsub.f32 1.0, %v1259
    %v1795 = vsub.f32 1.0, %v1261
    %v1796 = vsub.f32 1.0, %v1263
    %v1797 = vsub.f32 1.0, %v1265
    %v1798 = vmul.f32 %v1794, %v1786
    %v1799 = vmul.f32 %v1795, %v1787
    %v1800 = vmul.f32 %v1796, %v1788
    %v1801 = vmul.f32 %v1797, %v1789
    %v1802 = vadd.f32 %v1790, %v1798
    %v1803 = vadd.f32 %v1791, %v1799
    %v1804 = vadd.f32 %v1792, %v1800
    %v1805 = vadd.f32 %v1793, %v1801
    %1806 = vst [vmem:[#allocation13] sm:$0xff] %v1802
    %1807 = vst [vmem:[#allocation13 + $0x8] sm:$0xff] %v1803
    %1808 = vst [vmem:[#allocation13 + $0x10] sm:$0xff] %v1804
    %1809 = vst [vmem:[#allocation13 + $0x18] sm:$0xff] %v1805
    // Predicated region
    $region66: #{tpu_custom_call.1} parent=1 // pred_check
      _
    $region67: #{tpu_custom_call.1} parent=1 // pred_check_branch
      %1811 = sbr.rel (0) target = $region69
    $region68: #{tpu_custom_call.1} parent=1 // pred_region
      %s1813 = ssub.s32 512, 512
      %1814 = vsyncadd [#allocation4], %s1813
      %s1815 = sshll.u32 [#allocation13], 4
      %s1816 = int_to_ptr.vmem [resolvable:$true] %s1815
      %1821 = dma.vmem_to_hbm [thread:$0]  %s1816, 512, %s10, [#allocation4], 256, 256, 16
    $region69: #{tpu_custom_call.1} parent=1 // pred_fallthru
      _
    // Predicated region
    $region70: #{tpu_custom_call.1} parent=1 // pred_check
      _
    $region71: #{tpu_custom_call.1} parent=1 // pred_check_branch
      %1823 = sbr.rel (0) target = $region73
    $region72: #{tpu_custom_call.1} parent=1 // pred_region
      %1824 = dma.done [#allocation4], 512
    $region73: #{tpu_custom_call.1} parent=1 // pred_fallthru
      _
    %1825 = vsyncpa [#allocation3], 1
    %1826 = vsyncpa [#allocation6], 1
    %1827 = vsyncpa [#allocation9], 1
    %1828 = vsyncpa [#allocation12], 1
    %1829 = vsyncpa [#allocation4], 1

</llo_original>
